<compile_context>
chip_gen: v7x
topology: tpu7x:2x2x1
jax: 0.10.0
libtpu: 0.0.40
codegen_flags: <defaults>
</compile_context>

<pallas_src>
import jax
import jax.numpy as jnp
from jax.experimental import pallas as pl
from jax.experimental.pallas import tpu as pltpu


def _mlp_kernel(x_ref,
                w1_ref, b1_ref,
                w2_ref, b2_ref,
                w3_ref, b3_ref,
                w4_ref, b4_ref,
                o_ref):
    """Feature-major fused 4-layer MLP.

    x_ref:  (C, tn)      bf16  -- batch (2N columns) on lanes
    wK_ref: (outK, inK)  f32   -- transposed torch weights (VMEM-resident)
    bK_ref: (outK, 1)    f32   -- broadcast along lanes
    o_ref:  (out, tn)    bf16
    """
    x = x_ref[...].astype(jnp.float32)            # single upcast; f32 dots only
    h = jnp.dot(w1_ref[...], x, preferred_element_type=jnp.float32) + b1_ref[...]
    h = jnp.maximum(h, 0.0)
    h = jnp.dot(w2_ref[...], h, preferred_element_type=jnp.float32) + b2_ref[...]
    h = jnp.maximum(h, 0.0)
    h = jnp.dot(w3_ref[...], h, preferred_element_type=jnp.float32) + b3_ref[...]
    h = jnp.maximum(h, 0.0)
    y = jnp.dot(w4_ref[...], h, preferred_element_type=jnp.float32) + b4_ref[...]
    o_ref[...] = y.astype(o_ref.dtype)


def _pick_lane_tile(cols, target_steps=8, tn_min=512, tn_max=2048):
    """Lane tile: ~target_steps grid steps, multiple of 512, clamped [512, 2048]."""
    cols128 = ((cols + 127) // 128) * 128         # lane-dense minimum
    if cols128 <= tn_min:
        return cols128                            # tiny problem: one exact block
    tn = -(-cols // target_steps)                 # cdiv -> aim at ~target_steps
    tn = ((tn + 511) // 512) * 512                # round up to 512 lanes
    tn = max(tn_min, min(tn, tn_max))
    return min(tn, cols128)


def _mlp_pallas(x, tparams, out_sz):
    """x: (C, cols) bf16 with the batch on the lane axis -> (out_sz, cols) bf16."""
    w1t, b1c, w2t, b2c, w3t, b3c, w4t, b4c = tparams
    C, cols = x.shape
    H = w1t.shape[0]
    H4 = w3t.shape[0]
    tn = _pick_lane_tile(cols)
    n_steps = pl.cdiv(cols, tn)                   # partial last block handled by Pallas

    def _whole(arr):
        # Tiny weight / bias: full block, constant index_map -> VMEM-resident.
        return pl.BlockSpec(arr.shape, lambda i: (0, 0))

    flops = 2 * cols * (C * H + H * H + H * H4 + H4 * out_sz)
    bytes_accessed = (cols * C * 2 + cols * out_sz * 2
                      + sum(int(a.size) * 4 for a in tparams))

    return pl.pallas_call(
        _mlp_kernel,
        out_shape=jax.ShapeDtypeStruct((out_sz, cols), jnp.bfloat16),
        grid_spec=pltpu.PrefetchScalarGridSpec(
            num_scalar_prefetch=0,
            grid=(n_steps,),
            in_specs=[
                pl.BlockSpec((C, tn), lambda i: (0, i)),
                _whole(w1t), _whole(b1c),
                _whole(w2t), _whole(b2c),
                _whole(w3t), _whole(b3c),
                _whole(w4t), _whole(b4c),
            ],
            out_specs=pl.BlockSpec((out_sz, tn), lambda i: (0, i)),
        ),
        compiler_params=pltpu.CompilerParams(
            dimension_semantics=("parallel",)),
        cost_estimate=pl.CostEstimate(
            flops=flops, transcendentals=0, bytes_accessed=bytes_accessed),
    )(x, w1t, b1c, w2t, b2c, w3t, b3c, w4t, b4c)


@jax.jit
def update_sh_coeffs(tvec_tx, shs_coeffs, params):
    """Pallas-backed forward of Update_SH_Coeffs.

    tvec_tx:    (1, T) f32
    shs_coeffs: (N, C, 2) f32
    params:     (w: (in,out), b: (1,out)) x 4, f32 (torch nn.Linear layout)
    returns:    (N, output_size, 2) f32
    """
    w1, b1, w2, b2, w3, b3, w4, b4 = params
    N, C, _ = shs_coeffs.shape
    T = tvec_tx.shape[-1]
    out_sz = w4.shape[1]

    # Fold the constant tvec rows of layer 1 into its bias (once, exact in f32).
    b1_eff = b1 + jnp.dot(tvec_tx.reshape(1, T), w1[:T, :])       # (1, H)

    # Transposed f32 weights for the feature-major GEMMs; f32 column biases.
    w1t = w1[T:, :].T                                             # (H, C)
    w2t = w2.T                                                    # (H, H)
    w3t = w3.T                                                    # (H//4, H)
    w4t = w4.T                                                    # (out, H//4)
    b1c, b2c, b3c, b4c = b1_eff.T, b2.T, b3.T, b4.T               # (*, 1) f32

    # Batch-on-lanes input: cast to bf16 BEFORE the transpose (half the bytes
    # through the wrapper copy and the kernel's input DMA).
    # Columns [0:N) = amp, [N:2N) = pha.
    x = jnp.transpose(shs_coeffs.astype(jnp.bfloat16), (1, 2, 0)).reshape(C, 2 * N)

    y = _mlp_pallas(x, (w1t, b1c, w2t, b2c, w3t, b3c, w4t, b4c), out_sz)

    # Back to the module's (N, output_size, 2) layout; the f32 upcast rides on
    # this single transpose.  Consumers happy with (out, 2N) can use `y` directly.
    return jnp.transpose(y.reshape(out_sz, 2, N), (2, 0, 1)).astype(jnp.float32)


def init_params(key, input_size, hidden_size, output_size):
    """Deterministic synthetic init (PyTorch-Linear-like uniform fan-in)."""
    dims = [(input_size, hidden_size),
            (hidden_size, hidden_size),
            (hidden_size, hidden_size // 4),
            (hidden_size // 4, output_size)]
    params = []
    for (fan_in, fan_out) in dims:
        key, kw, kb = jax.random.split(key, 3)
        bound = 1.0 / (fan_in ** 0.5)
        w = jax.random.uniform(kw, (fan_in, fan_out), jnp.float32, -bound, bound)
        b = jax.random.uniform(kb, (1, fan_out), jnp.float32, -bound, bound)
        params += [w, b]
    return tuple(params)


def _reference(tvec_tx, shs_coeffs, params):
    """Pure-JAX f32 reference (exact module semantics) for the sanity check."""
    w1, b1, w2, b2, w3, b3, w4, b4 = params
    N = shs_coeffs.shape[0]
    tvec = jnp.broadcast_to(tvec_tx.reshape(1, -1), (N, tvec_tx.shape[-1]))

    def mlp(z):
        h = jnp.maximum(z @ w1 + b1, 0.0)
        h = jnp.maximum(h @ w2 + b2, 0.0)
        h = jnp.maximum(h @ w3 + b3, 0.0)
        return h @ w4 + b4

    a = mlp(jnp.concatenate([tvec, shs_coeffs[..., 0]], axis=-1))
    p = mlp(jnp.concatenate([tvec, shs_coeffs[..., 1]], axis=-1))
    return jnp.stack([a, p], axis=-1)


if __name__ == "__main__":
    # Module-consistent small shapes: T=4 tvec features, C=12 SH coeffs,
    # input_size = T + C = 16, hidden = 32, output = 12.  N = 320 points gives
    # 2N = 640 lane columns -> a 2-step grid with a partial last block, which
    # exercises the pipelined + masked-store paths.
    T, C = 4, 12
    input_size, hidden_size, output_size = T + C, 32, 12
    N = 320

    key = jax.random.PRNGKey(0)
    k_t, k_s, k_p = jax.random.split(key, 3)
    tvec_tx = jax.random.normal(k_t, (1, T), jnp.float32)
    shs_coeffs = jax.random.normal(k_s, (N, C, 2), jnp.float32)
    params = init_params(k_p, input_size, hidden_size, output_size)

    out = update_sh_coeffs(tvec_tx, shs_coeffs, params)
    out = jax.block_until_ready(out)

    ref = _reference(tvec_tx, shs_coeffs, params)
    assert out.shape == (N, output_size, 2)
    # bf16 input/output rounding (compute stays f32) -> loosened tolerance.
    assert jnp.allclose(out, ref, atol=5e-2, rtol=5e-2), (
        float(jnp.max(jnp.abs(out - ref))))

    print("KERNEL_OK")
</pallas_src>

<mosaic_0001>
module attributes {stable_mosaic.version = 11 : i64} {
  func.func @_mlp_kernel(%arg0: i32, %arg1: memref<12x512xbf16, #tpu.memory_space<vmem>>, %arg2: memref<32x12xf32, #tpu.memory_space<vmem>>, %arg3: memref<32x1xf32, #tpu.memory_space<vmem>>, %arg4: memref<32x32xf32, #tpu.memory_space<vmem>>, %arg5: memref<32x1xf32, #tpu.memory_space<vmem>>, %arg6: memref<8x32xf32, #tpu.memory_space<vmem>>, %arg7: memref<8x1xf32, #tpu.memory_space<vmem>>, %arg8: memref<12x8xf32, #tpu.memory_space<vmem>>, %arg9: memref<12x1xf32, #tpu.memory_space<vmem>>, %arg10: memref<12x512xbf16, #tpu.memory_space<vmem>>) attributes {dimension_semantics = [#tpu.dimension_semantics<parallel>], iteration_bounds = array<i64: 2>, scalar_prefetch = 0 : i64, scratch_operands = 0 : i64, tpu.core_type = #tpu.core_type<tc>, window_params = [{transform_indices = @transform_0, window_bounds = array<i64: 12, 512>}, {pipeline_mode = #tpu.pipeline_mode<synchronous>, transform_indices = @transform_1, window_bounds = array<i64: 32, 12>}, {pipeline_mode = #tpu.pipeline_mode<synchronous>, transform_indices = @transform_2, window_bounds = array<i64: 32, 1>}, {pipeline_mode = #tpu.pipeline_mode<synchronous>, transform_indices = @transform_3, window_bounds = array<i64: 32, 32>}, {pipeline_mode = #tpu.pipeline_mode<synchronous>, transform_indices = @transform_4, window_bounds = array<i64: 32, 1>}, {pipeline_mode = #tpu.pipeline_mode<synchronous>, transform_indices = @transform_5, window_bounds = array<i64: 8, 32>}, {pipeline_mode = #tpu.pipeline_mode<synchronous>, transform_indices = @transform_6, window_bounds = array<i64: 8, 1>}, {pipeline_mode = #tpu.pipeline_mode<synchronous>, transform_indices = @transform_7, window_bounds = array<i64: 12, 8>}, {pipeline_mode = #tpu.pipeline_mode<synchronous>, transform_indices = @transform_8, window_bounds = array<i64: 12, 1>}, {transform_indices = @transform_9, window_bounds = array<i64: 12, 512>}]} {
    %c0 = arith.constant 0 : index
    %c0_0 = arith.constant 0 : index
    %0 = vector.load %arg1[%c0, %c0_0] : memref<12x512xbf16, #tpu.memory_space<vmem>>, vector<12x512xbf16>
    %1 = arith.extf %0 : vector<12x512xbf16> to vector<12x512xf32>
    %c0_1 = arith.constant 0 : index
    %c0_2 = arith.constant 0 : index
    %2 = vector.load %arg2[%c0_1, %c0_2] : memref<32x12xf32, #tpu.memory_space<vmem>>, vector<32x12xf32>
    %cst = arith.constant dense<0.000000e+00> : vector<32x512xf32>
    %3 = tpu.matmul %2, %1, %cst {dimension_numbers = #tpu.dot_dimension_numbers<[1], [0], [0], [1], [0, 0, 1, 1], [], []>} : vector<32x12xf32>, vector<12x512xf32>, vector<32x512xf32> -> vector<32x512xf32>
    %c0_3 = arith.constant 0 : index
    %c0_4 = arith.constant 0 : index
    %4 = vector.load %arg3[%c0_3, %c0_4] : memref<32x1xf32, #tpu.memory_space<vmem>>, vector<32x1xf32>
    %5 = vector.broadcast %4 : vector<32x1xf32> to vector<32x512xf32>
    %6 = arith.addf %3, %5 : vector<32x512xf32>
    %cst_5 = arith.constant 0.000000e+00 : f32
    %7 = vector.broadcast %cst_5 : f32 to vector<32x512xf32>
    %8 = arith.maximumf %6, %7 : vector<32x512xf32>
    %c0_6 = arith.constant 0 : index
    %c0_7 = arith.constant 0 : index
    %9 = vector.load %arg4[%c0_6, %c0_7] : memref<32x32xf32, #tpu.memory_space<vmem>>, vector<32x32xf32>
    %cst_8 = arith.constant dense<0.000000e+00> : vector<32x512xf32>
    %10 = tpu.matmul %9, %8, %cst_8 {dimension_numbers = #tpu.dot_dimension_numbers<[1], [0], [0], [1], [0, 0, 1, 1], [], []>} : vector<32x32xf32>, vector<32x512xf32>, vector<32x512xf32> -> vector<32x512xf32>
    %c0_9 = arith.constant 0 : index
    %c0_10 = arith.constant 0 : index
    %11 = vector.load %arg5[%c0_9, %c0_10] : memref<32x1xf32, #tpu.memory_space<vmem>>, vector<32x1xf32>
    %12 = vector.broadcast %11 : vector<32x1xf32> to vector<32x512xf32>
    %13 = arith.addf %10, %12 : vector<32x512xf32>
    %cst_11 = arith.constant 0.000000e+00 : f32
    %14 = vector.broadcast %cst_11 : f32 to vector<32x512xf32>
    %15 = arith.maximumf %13, %14 : vector<32x512xf32>
    %c0_12 = arith.constant 0 : index
    %c0_13 = arith.constant 0 : index
    %16 = vector.load %arg6[%c0_12, %c0_13] : memref<8x32xf32, #tpu.memory_space<vmem>>, vector<8x32xf32>
    %cst_14 = arith.constant dense<0.000000e+00> : vector<8x512xf32>
    %17 = tpu.matmul %16, %15, %cst_14 {dimension_numbers = #tpu.dot_dimension_numbers<[1], [0], [0], [1], [0, 0, 1, 1], [], []>} : vector<8x32xf32>, vector<32x512xf32>, vector<8x512xf32> -> vector<8x512xf32>
    %c0_15 = arith.constant 0 : index
    %c0_16 = arith.constant 0 : index
    %18 = vector.load %arg7[%c0_15, %c0_16] : memref<8x1xf32, #tpu.memory_space<vmem>>, vector<8x1xf32>
    %19 = vector.broadcast %18 : vector<8x1xf32> to vector<8x512xf32>
    %20 = arith.addf %17, %19 : vector<8x512xf32>
    %cst_17 = arith.constant 0.000000e+00 : f32
    %21 = vector.broadcast %cst_17 : f32 to vector<8x512xf32>
    %22 = arith.maximumf %20, %21 : vector<8x512xf32>
    %c0_18 = arith.constant 0 : index
    %c0_19 = arith.constant 0 : index
    %23 = vector.load %arg8[%c0_18, %c0_19] : memref<12x8xf32, #tpu.memory_space<vmem>>, vector<12x8xf32>
    %cst_20 = arith.constant dense<0.000000e+00> : vector<12x512xf32>
    %24 = tpu.matmul %23, %22, %cst_20 {dimension_numbers = #tpu.dot_dimension_numbers<[1], [0], [0], [1], [0, 0, 1, 1], [], []>} : vector<12x8xf32>, vector<8x512xf32>, vector<12x512xf32> -> vector<12x512xf32>
    %c0_21 = arith.constant 0 : index
    %c0_22 = arith.constant 0 : index
    %25 = vector.load %arg9[%c0_21, %c0_22] : memref<12x1xf32, #tpu.memory_space<vmem>>, vector<12x1xf32>
    %26 = vector.broadcast %25 : vector<12x1xf32> to vector<12x512xf32>
    %27 = arith.addf %24, %26 : vector<12x512xf32>
    %28 = arith.truncf %27 : vector<12x512xf32> to vector<12x512xbf16>
    %c0_23 = arith.constant 0 : index
    %c0_24 = arith.constant 0 : index
    %29 = vector.load %arg10[%c0_23, %c0_24] : memref<12x512xbf16, #tpu.memory_space<vmem>>, vector<12x512xbf16>
    tpu.vector_store %arg10[%c0_23, %c0_24], %28 {strides = array<i32>} : memref<12x512xbf16, #tpu.memory_space<vmem>>, vector<12x512xbf16>,
    return
  }
  func.func @transform_0(%arg0: i32) -> (i32, i32) {
    %c0_i32 = arith.constant 0 : i32
    %c0_i32_0 = arith.constant 0 : i32
    return %c0_i32, %arg0 : i32, i32
  }
  func.func @transform_1(%arg0: i32) -> (i32, i32) {
    %c0_i32 = arith.constant 0 : i32
    %c0_i32_0 = arith.constant 0 : i32
    %c0_i32_1 = arith.constant 0 : i32
    return %c0_i32, %c0_i32_0 : i32, i32
  }
  func.func @transform_2(%arg0: i32) -> (i32, i32) {
    %c0_i32 = arith.constant 0 : i32
    %c0_i32_0 = arith.constant 0 : i32
    %c0_i32_1 = arith.constant 0 : i32
    return %c0_i32, %c0_i32_0 : i32, i32
  }
  func.func @transform_3(%arg0: i32) -> (i32, i32) {
    %c0_i32 = arith.constant 0 : i32
    %c0_i32_0 = arith.constant 0 : i32
    %c0_i32_1 = arith.constant 0 : i32
    return %c0_i32, %c0_i32_0 : i32, i32
  }
  func.func @transform_4(%arg0: i32) -> (i32, i32) {
    %c0_i32 = arith.constant 0 : i32
    %c0_i32_0 = arith.constant 0 : i32
    %c0_i32_1 = arith.constant 0 : i32
    return %c0_i32, %c0_i32_0 : i32, i32
  }
  func.func @transform_5(%arg0: i32) -> (i32, i32) {
    %c0_i32 = arith.constant 0 : i32
    %c0_i32_0 = arith.constant 0 : i32
    %c0_i32_1 = arith.constant 0 : i32
    return %c0_i32, %c0_i32_0 : i32, i32
  }
  func.func @transform_6(%arg0: i32) -> (i32, i32) {
    %c0_i32 = arith.constant 0 : i32
    %c0_i32_0 = arith.constant 0 : i32
    %c0_i32_1 = arith.constant 0 : i32
    return %c0_i32, %c0_i32_0 : i32, i32
  }
  func.func @transform_7(%arg0: i32) -> (i32, i32) {
    %c0_i32 = arith.constant 0 : i32
    %c0_i32_0 = arith.constant 0 : i32
    %c0_i32_1 = arith.constant 0 : i32
    return %c0_i32, %c0_i32_0 : i32, i32
  }
  func.func @transform_8(%arg0: i32) -> (i32, i32) {
    %c0_i32 = arith.constant 0 : i32
    %c0_i32_0 = arith.constant 0 : i32
    %c0_i32_1 = arith.constant 0 : i32
    return %c0_i32, %c0_i32_0 : i32, i32
  }
  func.func @transform_9(%arg0: i32) -> (i32, i32) {
    %c0_i32 = arith.constant 0 : i32
    %c0_i32_0 = arith.constant 0 : i32
    return %c0_i32, %arg0 : i32, i32
  }
}

</mosaic_0001>

<llo_original>
// kernel: update_sh_coeffs.1
$region0: #{update_sh_coeffs.1}
  #allocation0 [shape = 'u32[]', space=smem, size = 0x4, offset = 0x4, fixed_abs, tag = 'smem constant byte address 0x4 - core index']
  #allocation1 [shape = 'u32[144,128]{1,0:T(1,128)}', space=vmem, size = 0x12000, scoped, tag = 'internal scratch']
  %s0 = inlined_call_operand.vmem [shape: bf16[12,640], index: 0, kind: input, shape index: {}]
  %s1 = inlined_call_operand.vmem [shape: f32[32,12], index: 1, kind: input, shape index: {}]
  %s2 = inlined_call_operand.vmem [shape: f32[32,1], index: 2, kind: input, shape index: {}]
  %s3 = inlined_call_operand.vmem [shape: f32[32,32], index: 3, kind: input, shape index: {}]
  %s4 = inlined_call_operand.vmem [shape: f32[32,1], index: 4, kind: input, shape index: {}]
  %s5 = inlined_call_operand.vmem [shape: f32[8,32], index: 5, kind: input, shape index: {}]
  %s6 = inlined_call_operand.vmem [shape: f32[8,1], index: 6, kind: input, shape index: {}]
  %s7 = inlined_call_operand.vmem [shape: f32[12,8], index: 7, kind: input, shape index: {}]
  %s8 = inlined_call_operand.vmem [shape: f32[12,1], index: 8, kind: input, shape index: {}]
  %s9 = inlined_call_operand.vmem [shape: bf16[12,640], index: 9, kind: output, shape index: {}]
  %s10 = sld [smem:[#allocation0]]
  $region197: #{update_sh_coeffs.1} parent=0
    _
  %s12 = ssub.s32 1, %s10
  %s13 = scalar_select 0, %s12, %s10
  $region1: #{update_sh_coeffs.1} parent=0
    #allocation2 [shape = 'u8[32768]{0}', space=vmem, size = 0x8000, scoped, tag = 'input window, operand 0']
    #allocation3 [shape = 'u8[32768]{0}', space=vmem, size = 0x8000, scoped, tag = 'output window, operand 0']
    loop: start=0, step=1, limit=4
    $region2: #{update_sh_coeffs.1} parent=1 // loop_pre_header
      _
    $region3: #{update_sh_coeffs.1} parent=1 // loop_header
      %s15 = sphi 0, %s19
      %p16 = scmp.ge.s32.totalorder %s15, 4
      %s25 = sphi 0, %s27
      %s28 = sphi 0, %s25
      %s29 = sphi 0, %s28
      %s45 = sphi 0, %s29
      %s49 = sphi 0, %s49
      %s51 = sphi 0, %s49
      %s52 = sphi 0, %s51
      %s66 = sphi 0, %s52
      %s70 = sphi 0, %s70
      %s72 = sphi 0, %s70
      %s73 = sphi 0, %s72
      %s87 = sphi 0, %s73
      %s91 = sphi 0, %s91
      %s93 = sphi 0, %s91
      %s94 = sphi 0, %s93
      %s108 = sphi 0, %s94
      %s112 = sphi 0, %s112
      %s114 = sphi 0, %s112
      %s115 = sphi 0, %s114
      %s129 = sphi 0, %s115
      %s133 = sphi 0, %s133
      %s135 = sphi 0, %s133
      %s136 = sphi 0, %s135
      %s150 = sphi 0, %s136
      %s154 = sphi 0, %s154
      %s156 = sphi 0, %s154
      %s157 = sphi 0, %s156
      %s171 = sphi 0, %s157
      %s175 = sphi 0, %s175
      %s177 = sphi 0, %s175
      %s178 = sphi 0, %s177
      %s192 = sphi 0, %s178
      %s196 = sphi 0, %s196
      %s198 = sphi 0, %s196
      %s199 = sphi 0, %s198
      %s213 = sphi 0, %s199
      %s219 = sphi 0, %s221
      %s222 = sphi 0, %s219
      %s223 = sphi 0, %s222
      %s239 = sphi 0, %s223
    $region4: #{update_sh_coeffs.1} parent=1 // loop_header_branch
      %18 = sbr.rel (%p16) target = $region8
    $region5: #{update_sh_coeffs.1} parent=1 // loop_body
      %s20 = ssub.s32 %s15, 1
      %s21 = ssub.s32 %s15, 2
      %s22 = sadd.s32 %s15, 1
      %s23 = ssub.s32 %s15, %s22
      %p24 = scmp.eq.s32.totalorder %s23, 0
      %s26 = sadd.s32 %s25, 1
      %s27 = scalar_select %p24, %s25, %s26
      %p30 = pneg %p24
      %p31 = scmp.eq.s32.totalorder %s15, 1
      %p32 = por %p30, %p31
      %p33 = scmp.ne.s32.totalorder %s25, %s28
      %p34 = scmp.eq.s32.totalorder %s15, 0
      %p35 = por %p33, %p34
      %p36 = scmp.ne.s32.totalorder %s25, %s28
      %p37 = scmp.eq.s32.totalorder %s20, 1
      %p38 = por %p36, %p37
      %p39 = scmp.ne.s32.totalorder %s28, %s29
      %p40 = scmp.eq.s32.totalorder %s20, 0
      %p41 = por %p39, %p40
      %p42 = scmp.ne.s32.totalorder %s28, %s29
      %p43 = scmp.eq.s32.totalorder %s21, 1
      %p44 = por %p42, %p43
      %p46 = scmp.ne.s32.totalorder %s29, %s45
      %p47 = scmp.eq.s32.totalorder %s21, 0
      %p48 = por %p46, %p47
      %s50 = sadd.s32 %s49, 1
      %p53 = scmp.eq.s32.totalorder %s15, 1
      %p54 = scmp.ne.s32.totalorder %s49, %s51
      %p55 = scmp.eq.s32.totalorder %s15, 0
      %p56 = por %p54, %p55
      %p57 = scmp.ne.s32.totalorder %s49, %s51
      %p58 = scmp.eq.s32.totalorder %s20, 1
      %p59 = por %p57, %p58
      %p60 = scmp.ne.s32.totalorder %s51, %s52
      %p61 = scmp.eq.s32.totalorder %s20, 0
      %p62 = por %p60, %p61
      %p63 = scmp.ne.s32.totalorder %s51, %s52
      %p64 = scmp.eq.s32.totalorder %s21, 1
      %p65 = por %p63, %p64
      %p67 = scmp.ne.s32.totalorder %s52, %s66
      %p68 = scmp.eq.s32.totalorder %s21, 0
      %p69 = por %p67, %p68
      %s71 = sadd.s32 %s70, 1
      %p74 = scmp.eq.s32.totalorder %s15, 1
      %p75 = scmp.ne.s32.totalorder %s70, %s72
      %p76 = scmp.eq.s32.totalorder %s15, 0
      %p77 = por %p75, %p76
      %p78 = scmp.ne.s32.totalorder %s70, %s72
      %p79 = scmp.eq.s32.totalorder %s20, 1
      %p80 = por %p78, %p79
      %p81 = scmp.ne.s32.totalorder %s72, %s73
      %p82 = scmp.eq.s32.totalorder %s20, 0
      %p83 = por %p81, %p82
      %p84 = scmp.ne.s32.totalorder %s72, %s73
      %p85 = scmp.eq.s32.totalorder %s21, 1
      %p86 = por %p84, %p85
      %p88 = scmp.ne.s32.totalorder %s73, %s87
      %p89 = scmp.eq.s32.totalorder %s21, 0
      %p90 = por %p88, %p89
      %s92 = sadd.s32 %s91, 1
      %p95 = scmp.eq.s32.totalorder %s15, 1
      %p96 = scmp.ne.s32.totalorder %s91, %s93
      %p97 = scmp.eq.s32.totalorder %s15, 0
      %p98 = por %p96, %p97
      %p99 = scmp.ne.s32.totalorder %s91, %s93
      %p100 = scmp.eq.s32.totalorder %s20, 1
      %p101 = por %p99, %p100
      %p102 = scmp.ne.s32.totalorder %s93, %s94
      %p103 = scmp.eq.s32.totalorder %s20, 0
      %p104 = por %p102, %p103
      %p105 = scmp.ne.s32.totalorder %s93, %s94
      %p106 = scmp.eq.s32.totalorder %s21, 1
      %p107 = por %p105, %p106
      %p109 = scmp.ne.s32.totalorder %s94, %s108
      %p110 = scmp.eq.s32.totalorder %s21, 0
      %p111 = por %p109, %p110
      %s113 = sadd.s32 %s112, 1
      %p116 = scmp.eq.s32.totalorder %s15, 1
      %p117 = scmp.ne.s32.totalorder %s112, %s114
      %p118 = scmp.eq.s32.totalorder %s15, 0
      %p119 = por %p117, %p118
      %p120 = scmp.ne.s32.totalorder %s112, %s114
      %p121 = scmp.eq.s32.totalorder %s20, 1
      %p122 = por %p120, %p121
      %p123 = scmp.ne.s32.totalorder %s114, %s115
      %p124 = scmp.eq.s32.totalorder %s20, 0
      %p125 = por %p123, %p124
      %p126 = scmp.ne.s32.totalorder %s114, %s115
      %p127 = scmp.eq.s32.totalorder %s21, 1
      %p128 = por %p126, %p127
      %p130 = scmp.ne.s32.totalorder %s115, %s129
      %p131 = scmp.eq.s32.totalorder %s21, 0
      %p132 = por %p130, %p131
      %s134 = sadd.s32 %s133, 1
      %p137 = scmp.eq.s32.totalorder %s15, 1
      %p138 = scmp.ne.s32.totalorder %s133, %s135
      %p139 = scmp.eq.s32.totalorder %s15, 0
      %p140 = por %p138, %p139
      %p141 = scmp.ne.s32.totalorder %s133, %s135
      %p142 = scmp.eq.s32.totalorder %s20, 1
      %p143 = por %p141, %p142
      %p144 = scmp.ne.s32.totalorder %s135, %s136
      %p145 = scmp.eq.s32.totalorder %s20, 0
      %p146 = por %p144, %p145
      %p147 = scmp.ne.s32.totalorder %s135, %s136
      %p148 = scmp.eq.s32.totalorder %s21, 1
      %p149 = por %p147, %p148
      %p151 = scmp.ne.s32.totalorder %s136, %s150
      %p152 = scmp.eq.s32.totalorder %s21, 0
      %p153 = por %p151, %p152
      %s155 = sadd.s32 %s154, 1
      %p158 = scmp.eq.s32.totalorder %s15, 1
      %p159 = scmp.ne.s32.totalorder %s154, %s156
      %p160 = scmp.eq.s32.totalorder %s15, 0
      %p161 = por %p159, %p160
      %p162 = scmp.ne.s32.totalorder %s154, %s156
      %p163 = scmp.eq.s32.totalorder %s20, 1
      %p164 = por %p162, %p163
      %p165 = scmp.ne.s32.totalorder %s156, %s157
      %p166 = scmp.eq.s32.totalorder %s20, 0
      %p167 = por %p165, %p166
      %p168 = scmp.ne.s32.totalorder %s156, %s157
      %p169 = scmp.eq.s32.totalorder %s21, 1
      %p170 = por %p168, %p169
      %p172 = scmp.ne.s32.totalorder %s157, %s171
      %p173 = scmp.eq.s32.totalorder %s21, 0
      %p174 = por %p172, %p173
      %s176 = sadd.s32 %s175, 1
      %p179 = scmp.eq.s32.totalorder %s15, 1
      %p180 = scmp.ne.s32.totalorder %s175, %s177
      %p181 = scmp.eq.s32.totalorder %s15, 0
      %p182 = por %p180, %p181
      %p183 = scmp.ne.s32.totalorder %s175, %s177
      %p184 = scmp.eq.s32.totalorder %s20, 1
      %p185 = por %p183, %p184
      %p186 = scmp.ne.s32.totalorder %s177, %s178
      %p187 = scmp.eq.s32.totalorder %s20, 0
      %p188 = por %p186, %p187
      %p189 = scmp.ne.s32.totalorder %s177, %s178
      %p190 = scmp.eq.s32.totalorder %s21, 1
      %p191 = por %p189, %p190
      %p193 = scmp.ne.s32.totalorder %s178, %s192
      %p194 = scmp.eq.s32.totalorder %s21, 0
      %p195 = por %p193, %p194
      %s197 = sadd.s32 %s196, 1
      %p200 = scmp.eq.s32.totalorder %s15, 1
      %p201 = scmp.ne.s32.totalorder %s196, %s198
      %p202 = scmp.eq.s32.totalorder %s15, 0
      %p203 = por %p201, %p202
      %p204 = scmp.ne.s32.totalorder %s196, %s198
      %p205 = scmp.eq.s32.totalorder %s20, 1
      %p206 = por %p204, %p205
      %p207 = scmp.ne.s32.totalorder %s198, %s199
      %p208 = scmp.eq.s32.totalorder %s20, 0
      %p209 = por %p207, %p208
      %p210 = scmp.ne.s32.totalorder %s198, %s199
      %p211 = scmp.eq.s32.totalorder %s21, 1
      %p212 = por %p210, %p211
      %p214 = scmp.ne.s32.totalorder %s199, %s213
      %p215 = scmp.eq.s32.totalorder %s21, 0
      %p216 = por %p214, %p215
      %s217 = ssub.s32 %s15, %s22
      %p218 = scmp.eq.s32.totalorder %s217, 0
      %s220 = sadd.s32 %s219, 1
      %s221 = scalar_select %p218, %s219, %s220
      %p224 = pneg %p218
      %p225 = scmp.eq.s32.totalorder %s15, 1
      %p226 = por %p224, %p225
      %p227 = scmp.ne.s32.totalorder %s219, %s222
      %p228 = scmp.eq.s32.totalorder %s15, 0
      %p229 = por %p227, %p228
      %p230 = scmp.ne.s32.totalorder %s219, %s222
      %p231 = scmp.eq.s32.totalorder %s20, 1
      %p232 = por %p230, %p231
      %p233 = scmp.ne.s32.totalorder %s222, %s223
      %p234 = scmp.eq.s32.totalorder %s20, 0
      %p235 = por %p233, %p234
      %p236 = scmp.ne.s32.totalorder %s222, %s223
      %p237 = scmp.eq.s32.totalorder %s21, 1
      %p238 = por %p236, %p237
      %p240 = scmp.ne.s32.totalorder %s223, %s239
      %p241 = scmp.eq.s32.totalorder %s21, 0
      %p242 = por %p240, %p241
      %p243 = scmp.le.s32.totalorder 1, %s15
      %p244 = scmp.lt.s32.totalorder %s15, 3
      %p245 = pnand %p243, %p244
      %p246 = pneg %p245
      // Predicated region
      $region9: #{update_sh_coeffs.1} parent=5 // pred_check
        _
      $region10: #{update_sh_coeffs.1} parent=5 // pred_check_branch
        %248 = sbr.rel (%p245) target = $region12
      $region11: #{update_sh_coeffs.1} parent=5 // pred_region
        %s249 = ssub.s32 %s15, 1
        // Predicated region
        $region13: #{update_sh_coeffs.1} parent=11 // pred_check
          %p250 = pneg %p62
        $region14: #{update_sh_coeffs.1} parent=11 // pred_check_branch
          %252 = sbr.rel (%p250) target = $region16
        $region15: #{update_sh_coeffs.1} parent=11 // pred_region
          _
        $region16: #{update_sh_coeffs.1} parent=11 // pred_fallthru
          _
        // Predicated region
        $region17: #{update_sh_coeffs.1} parent=11 // pred_check
          %p253 = pneg %p83
        $region18: #{update_sh_coeffs.1} parent=11 // pred_check_branch
          %255 = sbr.rel (%p253) target = $region20
        $region19: #{update_sh_coeffs.1} parent=11 // pred_region
          _
        $region20: #{update_sh_coeffs.1} parent=11 // pred_fallthru
          _
        // Predicated region
        $region21: #{update_sh_coeffs.1} parent=11 // pred_check
          %p256 = pneg %p104
        $region22: #{update_sh_coeffs.1} parent=11 // pred_check_branch
          %258 = sbr.rel (%p256) target = $region24
        $region23: #{update_sh_coeffs.1} parent=11 // pred_region
          _
        $region24: #{update_sh_coeffs.1} parent=11 // pred_fallthru
          _
        // Predicated region
        $region25: #{update_sh_coeffs.1} parent=11 // pred_check
          %p259 = pneg %p125
        $region26: #{update_sh_coeffs.1} parent=11 // pred_check_branch
          %261 = sbr.rel (%p259) target = $region28
        $region27: #{update_sh_coeffs.1} parent=11 // pred_region
          _
        $region28: #{update_sh_coeffs.1} parent=11 // pred_fallthru
          _
        // Predicated region
        $region29: #{update_sh_coeffs.1} parent=11 // pred_check
          %p262 = pneg %p146
        $region30: #{update_sh_coeffs.1} parent=11 // pred_check_branch
          %264 = sbr.rel (%p262) target = $region32
        $region31: #{update_sh_coeffs.1} parent=11 // pred_region
          _
        $region32: #{update_sh_coeffs.1} parent=11 // pred_fallthru
          _
        // Predicated region
        $region33: #{update_sh_coeffs.1} parent=11 // pred_check
          %p265 = pneg %p167
        $region34: #{update_sh_coeffs.1} parent=11 // pred_check_branch
          %267 = sbr.rel (%p265) target = $region36
        $region35: #{update_sh_coeffs.1} parent=11 // pred_region
          _
        $region36: #{update_sh_coeffs.1} parent=11 // pred_fallthru
          _
        // Predicated region
        $region37: #{update_sh_coeffs.1} parent=11 // pred_check
          %p268 = pneg %p188
        $region38: #{update_sh_coeffs.1} parent=11 // pred_check_branch
          %270 = sbr.rel (%p268) target = $region40
        $region39: #{update_sh_coeffs.1} parent=11 // pred_region
          _
        $region40: #{update_sh_coeffs.1} parent=11 // pred_fallthru
          _
        // Predicated region
        $region41: #{update_sh_coeffs.1} parent=11 // pred_check
          %p271 = pneg %p209
        $region42: #{update_sh_coeffs.1} parent=11 // pred_check_branch
          %273 = sbr.rel (%p271) target = $region44
        $region43: #{update_sh_coeffs.1} parent=11 // pred_region
          _
        $region44: #{update_sh_coeffs.1} parent=11 // pred_fallthru
          _
      $region12: #{update_sh_coeffs.1} parent=5 // pred_fallthru
        _
      %p274 = scmp.lt.s32.totalorder %s15, 2
      // Predicated region
      $region45: #{update_sh_coeffs.1} parent=5 // pred_check
        %p275 = pneg %p274
      $region46: #{update_sh_coeffs.1} parent=5 // pred_check_branch
        %277 = sbr.rel (%p275) target = $region48
      $region47: #{update_sh_coeffs.1} parent=5 // pred_region
        // Predicated region
        $region49: #{update_sh_coeffs.1} parent=47 // pred_check
          %p278 = pneg %p35
        $region50: #{update_sh_coeffs.1} parent=47 // pred_check_branch
          %280 = sbr.rel (%p278) target = $region52
        $region51: #{update_sh_coeffs.1} parent=47 // pred_region
          %s281 = sand.u32 %s25, 1
          %s282 = sand.u32 %s25, 1
          %s283 = smul.addr %s282, 32
          %s284 = scalar_lea.vmem [#allocation2], %s283
          %s285 = smul.u32 4, %s15
          %s286 = ssub.s32 5, %s285
          %p287 = scmp.lt.s32.totalorder %s286, 4
          %s288 = scalar_select %p287, %s286, 4
          %s289 = smul.u32 128, %s288
          %p290 = scmp.ne.s32.totalorder 0, %s289
          %s291 = smul.addr %s285, 4
          %s292 = scalar_lea.vmem %s0, %s291
          %s293 = smul.u32 %s288, 4
          // Predicated region
          $region53: #{update_sh_coeffs.1} parent=51 // pred_check
            %p294 = pneg %p290
          $region54: #{update_sh_coeffs.1} parent=51 // pred_check_branch
            %296 = sbr.rel (%p294) target = $region56
          $region55: #{update_sh_coeffs.1} parent=51 // pred_region
            %p297 = scmp.lt.u32.totalorder %s293, 8
            %p298 = pneg %p297
            // Predicated region
            $region57: #{update_sh_coeffs.1} parent=55 // pred_check
              _
            $region58: #{update_sh_coeffs.1} parent=55 // pred_check_branch
              %300 = sbr.rel (%p297) target = $region60
            $region59: #{update_sh_coeffs.1} parent=55 // pred_region
              %s317 = sand.u32 %s293, 7
              %p318 = scmp.eq.s32.totalorder %s317, 0
              // Predicated region
              $region72: #{update_sh_coeffs.1} parent=59 // pred_check
                %p319 = pneg %p318
              $region73: #{update_sh_coeffs.1} parent=59 // pred_check_branch
                %321 = sbr.rel (%p319) target = $region75
              $region74: #{update_sh_coeffs.1} parent=59 // pred_region
                %s322 = sshrl.u32 %s293, 3
                %s323 = sshrl.u32 %s322, 5
                // While loop
                $region76: #{update_sh_coeffs.1} parent=74 // loop_pre_header
                  _
                $region77: #{update_sh_coeffs.1} parent=74 // loop_header
                  %s327 = sphi 0, %s329
                  %p328 = scmp.ge.s32.totalorder %s327, %s323
                  %s332 = sphi 0, %s465
                  %s333 = sphi %s292, %s468
                  %s334 = sphi %s284, %s469
                $region78: #{update_sh_coeffs.1} parent=74 // loop_header_branch
                  %331 = sbr.rel (%p328) target = $region82
                $region79: #{update_sh_coeffs.1} parent=74 // loop_body
                  %v335 = vld [vmem:[%s333] sm:$0xff]
                  %336 = vst [vmem:[%s334] sm:$0xff] %v335
                  %v337 = vld [vmem:[%s333 + $0x8] sm:$0xff]
                  %338 = vst [vmem:[%s334 + $0x8] sm:$0xff] %v337
                  %v339 = vld [vmem:[%s333 + $0x10] sm:$0xff]
                  %340 = vst [vmem:[%s334 + $0x10] sm:$0xff] %v339
                  %v341 = vld [vmem:[%s333 + $0x18] sm:$0xff]
                  %342 = vst [vmem:[%s334 + $0x18] sm:$0xff] %v341
                  %v343 = vld [vmem:[%s333 + $0x20] sm:$0xff]
                  %344 = vst [vmem:[%s334 + $0x20] sm:$0xff] %v343
                  %v345 = vld [vmem:[%s333 + $0x28] sm:$0xff]
                  %346 = vst [vmem:[%s334 + $0x28] sm:$0xff] %v345
                  %v347 = vld [vmem:[%s333 + $0x30] sm:$0xff]
                  %348 = vst [vmem:[%s334 + $0x30] sm:$0xff] %v347
                  %v349 = vld [vmem:[%s333 + $0x38] sm:$0xff]
                  %350 = vst [vmem:[%s334 + $0x38] sm:$0xff] %v349
                  %v351 = vld [vmem:[%s333 + $0x40] sm:$0xff]
                  %352 = vst [vmem:[%s334 + $0x40] sm:$0xff] %v351
                  %v353 = vld [vmem:[%s333 + $0x48] sm:$0xff]
                  %354 = vst [vmem:[%s334 + $0x48] sm:$0xff] %v353
                  %v355 = vld [vmem:[%s333 + $0x50] sm:$0xff]
                  %356 = vst [vmem:[%s334 + $0x50] sm:$0xff] %v355
                  %v357 = vld [vmem:[%s333 + $0x58] sm:$0xff]
                  %358 = vst [vmem:[%s334 + $0x58] sm:$0xff] %v357
                  %v359 = vld [vmem:[%s333 + $0x60] sm:$0xff]
                  %360 = vst [vmem:[%s334 + $0x60] sm:$0xff] %v359
                  %v361 = vld [vmem:[%s333 + $0x68] sm:$0xff]
                  %362 = vst [vmem:[%s334 + $0x68] sm:$0xff] %v361
                  %v363 = vld [vmem:[%s333 + $0x70] sm:$0xff]
                  %364 = vst [vmem:[%s334 + $0x70] sm:$0xff] %v363
                  %v365 = vld [vmem:[%s333 + $0x78] sm:$0xff]
                  %366 = vst [vmem:[%s334 + $0x78] sm:$0xff] %v365
                  %v367 = vld [vmem:[%s333 + $0x80] sm:$0xff]
                  %368 = vst [vmem:[%s334 + $0x80] sm:$0xff] %v367
                  %v369 = vld [vmem:[%s333 + $0x88] sm:$0xff]
                  %370 = vst [vmem:[%s334 + $0x88] sm:$0xff] %v369
                  %v371 = vld [vmem:[%s333 + $0x90] sm:$0xff]
                  %372 = vst [vmem:[%s334 + $0x90] sm:$0xff] %v371
                  %v373 = vld [vmem:[%s333 + $0x98] sm:$0xff]
                  %374 = vst [vmem:[%s334 + $0x98] sm:$0xff] %v373
                  %v375 = vld [vmem:[%s333 + $0xa0] sm:$0xff]
                  %376 = vst [vmem:[%s334 + $0xa0] sm:$0xff] %v375
                  %v377 = vld [vmem:[%s333 + $0xa8] sm:$0xff]
                  %378 = vst [vmem:[%s334 + $0xa8] sm:$0xff] %v377
                  %v379 = vld [vmem:[%s333 + $0xb0] sm:$0xff]
                  %380 = vst [vmem:[%s334 + $0xb0] sm:$0xff] %v379
                  %v381 = vld [vmem:[%s333 + $0xb8] sm:$0xff]
                  %382 = vst [vmem:[%s334 + $0xb8] sm:$0xff] %v381
                  %v383 = vld [vmem:[%s333 + $0xc0] sm:$0xff]
                  %384 = vst [vmem:[%s334 + $0xc0] sm:$0xff] %v383
                  %v385 = vld [vmem:[%s333 + $0xc8] sm:$0xff]
                  %386 = vst [vmem:[%s334 + $0xc8] sm:$0xff] %v385
                  %v387 = vld [vmem:[%s333 + $0xd0] sm:$0xff]
                  %388 = vst [vmem:[%s334 + $0xd0] sm:$0xff] %v387
                  %v389 = vld [vmem:[%s333 + $0xd8] sm:$0xff]
                  %390 = vst [vmem:[%s334 + $0xd8] sm:$0xff] %v389
                  %v391 = vld [vmem:[%s333 + $0xe0] sm:$0xff]
                  %392 = vst [vmem:[%s334 + $0xe0] sm:$0xff] %v391
                  %v393 = vld [vmem:[%s333 + $0xe8] sm:$0xff]
                  %394 = vst [vmem:[%s334 + $0xe8] sm:$0xff] %v393
                  %v395 = vld [vmem:[%s333 + $0xf0] sm:$0xff]
                  %396 = vst [vmem:[%s334 + $0xf0] sm:$0xff] %v395
                  %v397 = vld [vmem:[%s333 + $0xf8] sm:$0xff]
                  %398 = vst [vmem:[%s334 + $0xf8] sm:$0xff] %v397
                  %v399 = vld [vmem:[%s333 + $0x14] sm:$0xff]
                  %400 = vst [vmem:[%s334 + $0x10] sm:$0xff] %v399
                  %v401 = vld [vmem:[%s333 + $0x1c] sm:$0xff]
                  %402 = vst [vmem:[%s334 + $0x18] sm:$0xff] %v401
                  %v403 = vld [vmem:[%s333 + $0x24] sm:$0xff]
                  %404 = vst [vmem:[%s334 + $0x20] sm:$0xff] %v403
                  %v405 = vld [vmem:[%s333 + $0x2c] sm:$0xff]
                  %406 = vst [vmem:[%s334 + $0x28] sm:$0xff] %v405
                  %v407 = vld [vmem:[%s333 + $0x34] sm:$0xff]
                  %408 = vst [vmem:[%s334 + $0x30] sm:$0xff] %v407
                  %v409 = vld [vmem:[%s333 + $0x3c] sm:$0xff]
                  %410 = vst [vmem:[%s334 + $0x38] sm:$0xff] %v409
                  %v411 = vld [vmem:[%s333 + $0x44] sm:$0xff]
                  %412 = vst [vmem:[%s334 + $0x40] sm:$0xff] %v411
                  %v413 = vld [vmem:[%s333 + $0x4c] sm:$0xff]
                  %414 = vst [vmem:[%s334 + $0x48] sm:$0xff] %v413
                  %v415 = vld [vmem:[%s333 + $0x54] sm:$0xff]
                  %416 = vst [vmem:[%s334 + $0x50] sm:$0xff] %v415
                  %v417 = vld [vmem:[%s333 + $0x5c] sm:$0xff]
                  %418 = vst [vmem:[%s334 + $0x58] sm:$0xff] %v417
                  %v419 = vld [vmem:[%s333 + $0x64] sm:$0xff]
                  %420 = vst [vmem:[%s334 + $0x60] sm:$0xff] %v419
                  %v421 = vld [vmem:[%s333 + $0x6c] sm:$0xff]
                  %422 = vst [vmem:[%s334 + $0x68] sm:$0xff] %v421
                  %v423 = vld [vmem:[%s333 + $0x74] sm:$0xff]
                  %424 = vst [vmem:[%s334 + $0x70] sm:$0xff] %v423
                  %v425 = vld [vmem:[%s333 + $0x7c] sm:$0xff]
                  %426 = vst [vmem:[%s334 + $0x78] sm:$0xff] %v425
                  %v427 = vld [vmem:[%s333 + $0x84] sm:$0xff]
                  %428 = vst [vmem:[%s334 + $0x80] sm:$0xff] %v427
                  %v429 = vld [vmem:[%s333 + $0x8c] sm:$0xff]
                  %430 = vst [vmem:[%s334 + $0x88] sm:$0xff] %v429
                  %v431 = vld [vmem:[%s333 + $0x94] sm:$0xff]
                  %432 = vst [vmem:[%s334 + $0x90] sm:$0xff] %v431
                  %v433 = vld [vmem:[%s333 + $0x9c] sm:$0xff]
                  %434 = vst [vmem:[%s334 + $0x98] sm:$0xff] %v433
                  %v435 = vld [vmem:[%s333 + $0xa4] sm:$0xff]
                  %436 = vst [vmem:[%s334 + $0xa0] sm:$0xff] %v435
                  %v437 = vld [vmem:[%s333 + $0xac] sm:$0xff]
                  %438 = vst [vmem:[%s334 + $0xa8] sm:$0xff] %v437
                  %v439 = vld [vmem:[%s333 + $0xb4] sm:$0xff]
                  %440 = vst [vmem:[%s334 + $0xb0] sm:$0xff] %v439
                  %v441 = vld [vmem:[%s333 + $0xbc] sm:$0xff]
                  %442 = vst [vmem:[%s334 + $0xb8] sm:$0xff] %v441
                  %v443 = vld [vmem:[%s333 + $0xc4] sm:$0xff]
                  %444 = vst [vmem:[%s334 + $0xc0] sm:$0xff] %v443
                  %v445 = vld [vmem:[%s333 + $0xcc] sm:$0xff]
                  %446 = vst [vmem:[%s334 + $0xc8] sm:$0xff] %v445
                  %v447 = vld [vmem:[%s333 + $0xd4] sm:$0xff]
                  %448 = vst [vmem:[%s334 + $0xd0] sm:$0xff] %v447
                  %v449 = vld [vmem:[%s333 + $0xdc] sm:$0xff]
                  %450 = vst [vmem:[%s334 + $0xd8] sm:$0xff] %v449
                  %v451 = vld [vmem:[%s333 + $0xe4] sm:$0xff]
                  %452 = vst [vmem:[%s334 + $0xe0] sm:$0xff] %v451
                  %v453 = vld [vmem:[%s333 + $0xec] sm:$0xff]
                  %454 = vst [vmem:[%s334 + $0xe8] sm:$0xff] %v453
                  %v455 = vld [vmem:[%s333 + $0xf4] sm:$0xff]
                  %456 = vst [vmem:[%s334 + $0xf0] sm:$0xff] %v455
                  %v457 = vld [vmem:[%s333 + $0xfc] sm:$0xff]
                  %458 = vst [vmem:[%s334 + $0xf8] sm:$0xff] %v457
                  %v459 = vld [vmem:[%s333 + $0x104] sm:$0xff]
                  %460 = vst [vmem:[%s334 + $0x100] sm:$0xff] %v459
                  %v461 = vld [vmem:[%s333 + $0x10c] sm:$0xff]
                  %462 = vst [vmem:[%s334 + $0x108] sm:$0xff] %v461
                  %s463 = sadd.s32 1, %s332
                  %p464 = scmp.ge.s32.totalorder %s463, %s323
                  %s465 = scalar_select %p464, 0, %s463
                  %s466 = smul.u32 %s465, 256
                  %s467 = smul.u32 %s465, 256
                  %s468 = scalar_lea.vmem %s292, %s466
                  %s469 = scalar_lea.vmem %s284, %s467 [#allocation2]
                $region80: #{update_sh_coeffs.1} parent=74 // loop_footer
                  %s329 = sadd.s32 %s327, 1
                $region81: #{update_sh_coeffs.1} parent=74 // loop_footer_branch
                  %326 = sbr.rel target = $region77
                $region82: #{update_sh_coeffs.1} parent=74 // loop_exit
                  _
                %s470 = sshrl.u32 %s322, 5
                %s471 = sand.u32 %s322, 31
                %s472 = smul.u32 %s470, 32
                %s473 = smul.u32 128, %s472
                %s474 = sshra.s32 %s473, 4
                %s475 = scalar_lea.vmem %s292, %s474
                %s476 = smul.u32 128, %s472
                %s477 = sshra.s32 %s476, 4
                %s478 = scalar_lea.vmem %s284, %s477 [#allocation2]
                // While loop
                $region83: #{update_sh_coeffs.1} parent=74 // loop_pre_header
                  _
                $region84: #{update_sh_coeffs.1} parent=74 // loop_header
                  %s482 = sphi 0, %s484
                  %p483 = scmp.ge.s32.totalorder %s482, %s471
                  %s487 = sphi 0, %s496
                  %s488 = sphi %s475, %s499
                  %s489 = sphi %s478, %s500
                $region85: #{update_sh_coeffs.1} parent=74 // loop_header_branch
                  %486 = sbr.rel (%p483) target = $region89
                $region86: #{update_sh_coeffs.1} parent=74 // loop_body
                  %v490 = vld [vmem:[%s488] sm:$0xff]
                  %491 = vst [vmem:[%s489] sm:$0xff] %v490
                  %v492 = vld [vmem:[%s488 + $0x14] sm:$0xff]
                  %493 = vst [vmem:[%s489 + $0x10] sm:$0xff] %v492
                  %s494 = sadd.s32 1, %s487
                  %p495 = scmp.ge.s32.totalorder %s494, %s471
                  %s496 = scalar_select %p495, 0, %s494
                  %s497 = smul.u32 %s496, 8
                  %s498 = smul.u32 %s496, 8
                  %s499 = scalar_lea.vmem %s475, %s497
                  %s500 = scalar_lea.vmem %s478, %s498 [#allocation2]
                $region87: #{update_sh_coeffs.1} parent=74 // loop_footer
                  %s484 = sadd.s32 %s482, 1
                $region88: #{update_sh_coeffs.1} parent=74 // loop_footer_branch
                  %481 = sbr.rel target = $region84
                $region89: #{update_sh_coeffs.1} parent=74 // loop_exit
                  _
              $region75: #{update_sh_coeffs.1} parent=59 // pred_fallthru
                _
              %p501 = pneg %p318
              // Predicated region
              $region90: #{update_sh_coeffs.1} parent=59 // pred_check
                _
              $region91: #{update_sh_coeffs.1} parent=59 // pred_check_branch
                %503 = sbr.rel (%p318) target = $region93
              $region92: #{update_sh_coeffs.1} parent=59 // pred_region
                %s504 = sand.u32 %s293, 7
                %s505 = ssub.s32 %s293, %s504
                %s506 = scalar_lea.vmem %s292, %s505
                %s507 = ssub.s32 %s293, %s504
                %s508 = scalar_lea.vmem %s284, %s507 [#allocation2]
                %s509 = sshrl.u32 %s293, 3
                %s510 = sshrl.u32 %s509, 5
                // While loop
                $region94: #{update_sh_coeffs.1} parent=92 // loop_pre_header
                  _
                $region95: #{update_sh_coeffs.1} parent=92 // loop_header
                  %s514 = sphi 0, %s516
                  %p515 = scmp.ge.s32.totalorder %s514, %s510
                  %s519 = sphi 0, %s652
                  %s520 = sphi %s292, %s655
                  %s521 = sphi %s284, %s656
                $region96: #{update_sh_coeffs.1} parent=92 // loop_header_branch
                  %518 = sbr.rel (%p515) target = $region100
                $region97: #{update_sh_coeffs.1} parent=92 // loop_body
                  %v522 = vld [vmem:[%s520] sm:$0xff]
                  %523 = vst [vmem:[%s521] sm:$0xff] %v522
                  %v524 = vld [vmem:[%s520 + $0x8] sm:$0xff]
                  %525 = vst [vmem:[%s521 + $0x8] sm:$0xff] %v524
                  %v526 = vld [vmem:[%s520 + $0x10] sm:$0xff]
                  %527 = vst [vmem:[%s521 + $0x10] sm:$0xff] %v526
                  %v528 = vld [vmem:[%s520 + $0x18] sm:$0xff]
                  %529 = vst [vmem:[%s521 + $0x18] sm:$0xff] %v528
                  %v530 = vld [vmem:[%s520 + $0x20] sm:$0xff]
                  %531 = vst [vmem:[%s521 + $0x20] sm:$0xff] %v530
                  %v532 = vld [vmem:[%s520 + $0x28] sm:$0xff]
                  %533 = vst [vmem:[%s521 + $0x28] sm:$0xff] %v532
                  %v534 = vld [vmem:[%s520 + $0x30] sm:$0xff]
                  %535 = vst [vmem:[%s521 + $0x30] sm:$0xff] %v534
                  %v536 = vld [vmem:[%s520 + $0x38] sm:$0xff]
                  %537 = vst [vmem:[%s521 + $0x38] sm:$0xff] %v536
                  %v538 = vld [vmem:[%s520 + $0x40] sm:$0xff]
                  %539 = vst [vmem:[%s521 + $0x40] sm:$0xff] %v538
                  %v540 = vld [vmem:[%s520 + $0x48] sm:$0xff]
                  %541 = vst [vmem:[%s521 + $0x48] sm:$0xff] %v540
                  %v542 = vld [vmem:[%s520 + $0x50] sm:$0xff]
                  %543 = vst [vmem:[%s521 + $0x50] sm:$0xff] %v542
                  %v544 = vld [vmem:[%s520 + $0x58] sm:$0xff]
                  %545 = vst [vmem:[%s521 + $0x58] sm:$0xff] %v544
                  %v546 = vld [vmem:[%s520 + $0x60] sm:$0xff]
                  %547 = vst [vmem:[%s521 + $0x60] sm:$0xff] %v546
                  %v548 = vld [vmem:[%s520 + $0x68] sm:$0xff]
                  %549 = vst [vmem:[%s521 + $0x68] sm:$0xff] %v548
                  %v550 = vld [vmem:[%s520 + $0x70] sm:$0xff]
                  %551 = vst [vmem:[%s521 + $0x70] sm:$0xff] %v550
                  %v552 = vld [vmem:[%s520 + $0x78] sm:$0xff]
                  %553 = vst [vmem:[%s521 + $0x78] sm:$0xff] %v552
                  %v554 = vld [vmem:[%s520 + $0x80] sm:$0xff]
                  %555 = vst [vmem:[%s521 + $0x80] sm:$0xff] %v554
                  %v556 = vld [vmem:[%s520 + $0x88] sm:$0xff]
                  %557 = vst [vmem:[%s521 + $0x88] sm:$0xff] %v556
                  %v558 = vld [vmem:[%s520 + $0x90] sm:$0xff]
                  %559 = vst [vmem:[%s521 + $0x90] sm:$0xff] %v558
                  %v560 = vld [vmem:[%s520 + $0x98] sm:$0xff]
                  %561 = vst [vmem:[%s521 + $0x98] sm:$0xff] %v560
                  %v562 = vld [vmem:[%s520 + $0xa0] sm:$0xff]
                  %563 = vst [vmem:[%s521 + $0xa0] sm:$0xff] %v562
                  %v564 = vld [vmem:[%s520 + $0xa8] sm:$0xff]
                  %565 = vst [vmem:[%s521 + $0xa8] sm:$0xff] %v564
                  %v566 = vld [vmem:[%s520 + $0xb0] sm:$0xff]
                  %567 = vst [vmem:[%s521 + $0xb0] sm:$0xff] %v566
                  %v568 = vld [vmem:[%s520 + $0xb8] sm:$0xff]
                  %569 = vst [vmem:[%s521 + $0xb8] sm:$0xff] %v568
                  %v570 = vld [vmem:[%s520 + $0xc0] sm:$0xff]
                  %571 = vst [vmem:[%s521 + $0xc0] sm:$0xff] %v570
                  %v572 = vld [vmem:[%s520 + $0xc8] sm:$0xff]
                  %573 = vst [vmem:[%s521 + $0xc8] sm:$0xff] %v572
                  %v574 = vld [vmem:[%s520 + $0xd0] sm:$0xff]
                  %575 = vst [vmem:[%s521 + $0xd0] sm:$0xff] %v574
                  %v576 = vld [vmem:[%s520 + $0xd8] sm:$0xff]
                  %577 = vst [vmem:[%s521 + $0xd8] sm:$0xff] %v576
                  %v578 = vld [vmem:[%s520 + $0xe0] sm:$0xff]
                  %579 = vst [vmem:[%s521 + $0xe0] sm:$0xff] %v578
                  %v580 = vld [vmem:[%s520 + $0xe8] sm:$0xff]
                  %581 = vst [vmem:[%s521 + $0xe8] sm:$0xff] %v580
                  %v582 = vld [vmem:[%s520 + $0xf0] sm:$0xff]
                  %583 = vst [vmem:[%s521 + $0xf0] sm:$0xff] %v582
                  %v584 = vld [vmem:[%s520 + $0xf8] sm:$0xff]
                  %585 = vst [vmem:[%s521 + $0xf8] sm:$0xff] %v584
                  %v586 = vld [vmem:[%s520 + $0x14] sm:$0xff]
                  %587 = vst [vmem:[%s521 + $0x10] sm:$0xff] %v586
                  %v588 = vld [vmem:[%s520 + $0x1c] sm:$0xff]
                  %589 = vst [vmem:[%s521 + $0x18] sm:$0xff] %v588
                  %v590 = vld [vmem:[%s520 + $0x24] sm:$0xff]
                  %591 = vst [vmem:[%s521 + $0x20] sm:$0xff] %v590
                  %v592 = vld [vmem:[%s520 + $0x2c] sm:$0xff]
                  %593 = vst [vmem:[%s521 + $0x28] sm:$0xff] %v592
                  %v594 = vld [vmem:[%s520 + $0x34] sm:$0xff]
                  %595 = vst [vmem:[%s521 + $0x30] sm:$0xff] %v594
                  %v596 = vld [vmem:[%s520 + $0x3c] sm:$0xff]
                  %597 = vst [vmem:[%s521 + $0x38] sm:$0xff] %v596
                  %v598 = vld [vmem:[%s520 + $0x44] sm:$0xff]
                  %599 = vst [vmem:[%s521 + $0x40] sm:$0xff] %v598
                  %v600 = vld [vmem:[%s520 + $0x4c] sm:$0xff]
                  %601 = vst [vmem:[%s521 + $0x48] sm:$0xff] %v600
                  %v602 = vld [vmem:[%s520 + $0x54] sm:$0xff]
                  %603 = vst [vmem:[%s521 + $0x50] sm:$0xff] %v602
                  %v604 = vld [vmem:[%s520 + $0x5c] sm:$0xff]
                  %605 = vst [vmem:[%s521 + $0x58] sm:$0xff] %v604
                  %v606 = vld [vmem:[%s520 + $0x64] sm:$0xff]
                  %607 = vst [vmem:[%s521 + $0x60] sm:$0xff] %v606
                  %v608 = vld [vmem:[%s520 + $0x6c] sm:$0xff]
                  %609 = vst [vmem:[%s521 + $0x68] sm:$0xff] %v608
                  %v610 = vld [vmem:[%s520 + $0x74] sm:$0xff]
                  %611 = vst [vmem:[%s521 + $0x70] sm:$0xff] %v610
                  %v612 = vld [vmem:[%s520 + $0x7c] sm:$0xff]
                  %613 = vst [vmem:[%s521 + $0x78] sm:$0xff] %v612
                  %v614 = vld [vmem:[%s520 + $0x84] sm:$0xff]
                  %615 = vst [vmem:[%s521 + $0x80] sm:$0xff] %v614
                  %v616 = vld [vmem:[%s520 + $0x8c] sm:$0xff]
                  %617 = vst [vmem:[%s521 + $0x88] sm:$0xff] %v616
                  %v618 = vld [vmem:[%s520 + $0x94] sm:$0xff]
                  %619 = vst [vmem:[%s521 + $0x90] sm:$0xff] %v618
                  %v620 = vld [vmem:[%s520 + $0x9c] sm:$0xff]
                  %621 = vst [vmem:[%s521 + $0x98] sm:$0xff] %v620
                  %v622 = vld [vmem:[%s520 + $0xa4] sm:$0xff]
                  %623 = vst [vmem:[%s521 + $0xa0] sm:$0xff] %v622
                  %v624 = vld [vmem:[%s520 + $0xac] sm:$0xff]
                  %625 = vst [vmem:[%s521 + $0xa8] sm:$0xff] %v624
                  %v626 = vld [vmem:[%s520 + $0xb4] sm:$0xff]
                  %627 = vst [vmem:[%s521 + $0xb0] sm:$0xff] %v626
                  %v628 = vld [vmem:[%s520 + $0xbc] sm:$0xff]
                  %629 = vst [vmem:[%s521 + $0xb8] sm:$0xff] %v628
                  %v630 = vld [vmem:[%s520 + $0xc4] sm:$0xff]
                  %631 = vst [vmem:[%s521 + $0xc0] sm:$0xff] %v630
                  %v632 = vld [vmem:[%s520 + $0xcc] sm:$0xff]
                  %633 = vst [vmem:[%s521 + $0xc8] sm:$0xff] %v632
                  %v634 = vld [vmem:[%s520 + $0xd4] sm:$0xff]
                  %635 = vst [vmem:[%s521 + $0xd0] sm:$0xff] %v634
                  %v636 = vld [vmem:[%s520 + $0xdc] sm:$0xff]
                  %637 = vst [vmem:[%s521 + $0xd8] sm:$0xff] %v636
                  %v638 = vld [vmem:[%s520 + $0xe4] sm:$0xff]
                  %639 = vst [vmem:[%s521 + $0xe0] sm:$0xff] %v638
                  %v640 = vld [vmem:[%s520 + $0xec] sm:$0xff]
                  %641 = vst [vmem:[%s521 + $0xe8] sm:$0xff] %v640
                  %v642 = vld [vmem:[%s520 + $0xf4] sm:$0xff]
                  %643 = vst [vmem:[%s521 + $0xf0] sm:$0xff] %v642
                  %v644 = vld [vmem:[%s520 + $0xfc] sm:$0xff]
                  %645 = vst [vmem:[%s521 + $0xf8] sm:$0xff] %v644
                  %v646 = vld [vmem:[%s520 + $0x104] sm:$0xff]
                  %647 = vst [vmem:[%s521 + $0x100] sm:$0xff] %v646
                  %v648 = vld [vmem:[%s520 + $0x10c] sm:$0xff]
                  %649 = vst [vmem:[%s521 + $0x108] sm:$0xff] %v648
                  %s650 = sadd.s32 1, %s519
                  %p651 = scmp.ge.s32.totalorder %s650, %s510
                  %s652 = scalar_select %p651, 0, %s650
                  %s653 = smul.u32 %s652, 256
                  %s654 = smul.u32 %s652, 256
                  %s655 = scalar_lea.vmem %s292, %s653
                  %s656 = scalar_lea.vmem %s284, %s654 [#allocation2]
                $region98: #{update_sh_coeffs.1} parent=92 // loop_footer
                  %s516 = sadd.s32 %s514, 1
                $region99: #{update_sh_coeffs.1} parent=92 // loop_footer_branch
                  %513 = sbr.rel target = $region95
                $region100: #{update_sh_coeffs.1} parent=92 // loop_exit
                  _
                %s657 = sshrl.u32 %s509, 5
                %s658 = sand.u32 %s509, 31
                %s659 = smul.u32 %s657, 32
                %s660 = smul.u32 128, %s659
                %s661 = sshra.s32 %s660, 4
                %s662 = scalar_lea.vmem %s292, %s661
                %s663 = smul.u32 128, %s659
                %s664 = sshra.s32 %s663, 4
                %s665 = scalar_lea.vmem %s284, %s664 [#allocation2]
                // While loop
                $region101: #{update_sh_coeffs.1} parent=92 // loop_pre_header
                  _
                $region102: #{update_sh_coeffs.1} parent=92 // loop_header
                  %s669 = sphi 0, %s671
                  %p670 = scmp.ge.s32.totalorder %s669, %s658
                  %s674 = sphi 0, %s683
                  %s675 = sphi %s662, %s686
                  %s676 = sphi %s665, %s687
                $region103: #{update_sh_coeffs.1} parent=92 // loop_header_branch
                  %673 = sbr.rel (%p670) target = $region107
                $region104: #{update_sh_coeffs.1} parent=92 // loop_body
                  %v677 = vld [vmem:[%s675] sm:$0xff]
                  %678 = vst [vmem:[%s676] sm:$0xff] %v677
                  %v679 = vld [vmem:[%s675 + $0x14] sm:$0xff]
                  %680 = vst [vmem:[%s676 + $0x10] sm:$0xff] %v679
                  %s681 = sadd.s32 1, %s674
                  %p682 = scmp.ge.s32.totalorder %s681, %s658
                  %s683 = scalar_select %p682, 0, %s681
                  %s684 = smul.u32 %s683, 8
                  %s685 = smul.u32 %s683, 8
                  %s686 = scalar_lea.vmem %s662, %s684
                  %s687 = scalar_lea.vmem %s665, %s685 [#allocation2]
                $region105: #{update_sh_coeffs.1} parent=92 // loop_footer
                  %s671 = sadd.s32 %s669, 1
                $region106: #{update_sh_coeffs.1} parent=92 // loop_footer_branch
                  %668 = sbr.rel target = $region102
                $region107: #{update_sh_coeffs.1} parent=92 // loop_exit
                  _
                %s688 = sshllo.u32 0, %s504
                loop: start=0, step=1, limit=1
                $region108: #{update_sh_coeffs.1} parent=92 // loop_pre_header
                  _
                $region109: #{update_sh_coeffs.1} parent=92 // loop_header
                  %s690 = sphi 0, %s694
                  %p691 = scmp.ge.s32.totalorder %s690, 1
                  %s695 = sphi %s506, %s506
                  %s696 = sphi %s508, %s508
                $region110: #{update_sh_coeffs.1} parent=92 // loop_header_branch
                  %693 = sbr.rel (%p691) target = $region114
                $region111: #{update_sh_coeffs.1} parent=92 // loop_body
                  %v697 = vld [vmem:[%s695] sm:%s688]
                  %698 = vst [vmem:[%s696] sm:%s688] %v697
                  %v699 = vld [vmem:[%s695 + $0x14] sm:%s688]
                  %700 = vst [vmem:[%s696 + $0x10] sm:%s688] %v699
                $region112: #{update_sh_coeffs.1} parent=92 // loop_footer
                  %s694 = sadd.s32 1, %s690
                $region113: #{update_sh_coeffs.1} parent=92 // loop_footer_branch
                  %689 = sbr.rel target = $region109
                $region114: #{update_sh_coeffs.1} parent=92 // loop_exit
                  _
              $region93: #{update_sh_coeffs.1} parent=59 // pred_fallthru
                _
            $region60: #{update_sh_coeffs.1} parent=55 // pred_fallthru
              _
            // Predicated region
            $region61: #{update_sh_coeffs.1} parent=55 // pred_check
              %p301 = pneg %p297
            $region62: #{update_sh_coeffs.1} parent=55 // pred_check_branch
              %303 = sbr.rel (%p301) target = $region64
            $region63: #{update_sh_coeffs.1} parent=55 // pred_region
              %s304 = sshllo.u32 0, %s293
              loop: start=0, step=1, limit=1
              $region65: #{update_sh_coeffs.1} parent=63 // loop_pre_header
                _
              $region66: #{update_sh_coeffs.1} parent=63 // loop_header
                %s306 = sphi 0, %s310
                %p307 = scmp.ge.s32.totalorder %s306, 1
                %s311 = sphi %s292, %s292
                %s312 = sphi %s284, %s284
              $region67: #{update_sh_coeffs.1} parent=63 // loop_header_branch
                %309 = sbr.rel (%p307) target = $region71
              $region68: #{update_sh_coeffs.1} parent=63 // loop_body
                %v313 = vld [vmem:[%s311] sm:%s304]
                %314 = vst [vmem:[%s312] sm:%s304] %v313
                %v315 = vld [vmem:[%s311 + $0x14] sm:%s304]
                %316 = vst [vmem:[%s312 + $0x10] sm:%s304] %v315
              $region69: #{update_sh_coeffs.1} parent=63 // loop_footer
                %s310 = sadd.s32 1, %s306
              $region70: #{update_sh_coeffs.1} parent=63 // loop_footer_branch
                %305 = sbr.rel target = $region66
              $region71: #{update_sh_coeffs.1} parent=63 // loop_exit
                _
            $region64: #{update_sh_coeffs.1} parent=55 // pred_fallthru
              _
          $region56: #{update_sh_coeffs.1} parent=51 // pred_fallthru
            _
          %701 = vnop
        $region52: #{update_sh_coeffs.1} parent=47 // pred_fallthru
          _
      $region48: #{update_sh_coeffs.1} parent=5 // pred_fallthru
        _
      %p702 = scmp.le.s32.totalorder 1, %s15
      %p703 = scmp.lt.s32.totalorder %s15, 3
      %p704 = pnand %p702, %p703
      %p705 = pneg %p704
      // Predicated region
      $region115: #{update_sh_coeffs.1} parent=5 // pred_check
        _
      $region116: #{update_sh_coeffs.1} parent=5 // pred_check_branch
        %707 = sbr.rel (%p704) target = $region118
      $region117: #{update_sh_coeffs.1} parent=5 // pred_region
        %s708 = ssub.s32 %s15, 1
        %s709 = sand.u32 %s28, 1
        %s710 = sand.u32 %s28, 1
        %s711 = smul.addr %s710, 32
        %s712 = scalar_lea.vmem [#allocation2], %s711
        // Predicated region
        $region119: #{update_sh_coeffs.1} parent=117 // pred_check
          %p713 = pneg %p41
        $region120: #{update_sh_coeffs.1} parent=117 // pred_check_branch
          %715 = sbr.rel (%p713) target = $region122
        $region121: #{update_sh_coeffs.1} parent=117 // pred_region
          _
        $region122: #{update_sh_coeffs.1} parent=117 // pred_fallthru
          _
        %s716 = sand.u32 %s28, 1
        %s717 = sand.u32 %s28, 1
        %s718 = smul.addr %s717, 32
        %s719 = scalar_lea.vmem [#allocation2], %s718
        %p720 = pneg %p41
        %p721 = pneg %p38
        %p722 = pneg %p62
        %p723 = pneg %p59
        %p724 = pneg %p83
        %p725 = pneg %p80
        %p726 = pneg %p104
        %p727 = pneg %p101
        %p728 = pneg %p125
        %p729 = pneg %p122
        %p730 = pneg %p146
        %p731 = pneg %p143
        %p732 = pneg %p167
        %p733 = pneg %p164
        %p734 = pneg %p188
        %p735 = pneg %p185
        %p736 = pneg %p209
        %p737 = pneg %p206
        %p738 = pneg %p235
        %p739 = pneg %p232
        %s740 = sand.u32 %s222, 1
        %s741 = sand.u32 %s222, 1
        %s742 = smul.addr %s741, 32
        %s743 = scalar_lea.vmem [#allocation3], %s742
        %s744 = smul.u32 4, %s20
        %s745 = ssub.s32 5, %s744
        %p746 = scmp.lt.s32.totalorder %s745, 4
        %s747 = scalar_select %p746, %s745, 4
        %s748 = smul.u32 128, %s747
        %s749 = smul.u32 4, %s20
        %s750 = ssub.s32 5, %s749
        %p751 = scmp.lt.s32.totalorder %s750, 4
        %s752 = scalar_select %p751, %s750, 4
        %s753 = smul.u32 128, %s752
        %v754 = vld [vmem:[%s712] sm:$0xff]
        %v755 = vld [vmem:[%s712 + $0x8] sm:$0xff]
        %v756 = vld [vmem:[%s712 + $0x10] sm:$0x33]
        %v757 = vld [vmem:[%s712 + $0x18] sm:$0x33]
        %v758 = vunpack.c.l.bf16 %v754
        %v759 = vunpack.c.h.bf16 %v754
        %v760 = vunpack.c.l.bf16 %v755
        %v761 = vunpack.c.h.bf16 %v755
        %v762 = vunpack.c.l.bf16 %v756
        %v763 = vunpack.c.h.bf16 %v756
        %v764 = vunpack.c.l.bf16 %v757
        %v765 = vunpack.c.h.bf16 %v757
        %v766 = vld [vmem:[%s1] sm:$0xff]
        %v767 = vld [vmem:[%s1 + $0x8] sm:$0xff]
        %v768 = vld [vmem:[%s1 + $0x10] sm:$0xff]
        %v769 = vld [vmem:[%s1 + $0x18] sm:$0xff]
        %v770 = vld [vmem:[%s2] sm:$0xff]
        %v771 = vld [vmem:[%s2 + $0x8] sm:$0xff]
        %v772 = vld [vmem:[%s2 + $0x10] sm:$0xff]
        %v773 = vld [vmem:[%s2 + $0x18] sm:$0xff]
        %775 = vset.pattern.permute.xlu0 0
        %776 = vperm.xlu0 %775, %v770
        %v777 = vpop.permute.xlu0 %776
        %780 = vset.pattern.permute.xlu0 0
        %781 = vperm.xlu0 %780, %v771
        %v782 = vpop.permute.xlu0 %781
        %785 = vset.pattern.permute.xlu0 0
        %786 = vperm.xlu0 %785, %v772
        %v787 = vpop.permute.xlu0 %786
        %790 = vset.pattern.permute.xlu0 0
        %791 = vperm.xlu0 %790, %v773
        %v792 = vpop.permute.xlu0 %791
        %vm794 = vcmask 97280
        %v796 = vsel %vm794, %v766, 0
        %v799 = vsel %vm794, %v767, 0
        %v802 = vsel %vm794, %v768, 0
        %v805 = vsel %vm794, %v769, 0
        %vm807 = vcmask 1043456
        %v809 = vsel %vm807, %v762, 0
        %v812 = vsel %vm807, %v763, 0
        %v815 = vsel %vm807, %v764, 0
        %v818 = vsel %vm807, %v765, 0
        %820 = vmatprep.subr.mxu0 %v759
        %821 = vmatpush1.msra.mxu0 %v758
        %822 = vmatprep.subr.mxu0 %v812
        %823 = vmatpush1.msra.mxu0 %v809
        %824 = vmatprep.subr.mxu0 0.0
        %825 = vmatpush1.msra.mxu0 0.0
        %826 = vmatprep.subr.mxu0 0.0
        %827 = vmatpush1.msra.mxu0 0.0
        %828 = vmatprep.subr.mxu0 0.0
        %829 = vmatpush1.msra.mxu0 0.0
        %830 = vmatprep.subr.mxu0 0.0
        %831 = vmatpush1.msra.mxu0 0.0
        %832 = vmatprep.subr.mxu0 0.0
        %833 = vmatpush1.msra.mxu0 0.0
        %834 = vmatprep.subr.mxu0 0.0
        %835 = vmatpush1.msra.mxu0 0.0
        %836 = vmatprep.subr.mxu0 0.0
        %837 = vmatpush1.msra.mxu0 0.0
        %838 = vmatprep.subr.mxu0 0.0
        %839 = vmatpush1.msra.mxu0 0.0
        %840 = vmatprep.subr.mxu0 0.0
        %841 = vmatpush1.msra.mxu0 0.0
        %842 = vmatprep.subr.mxu0 0.0
        %843 = vmatpush1.msra.mxu0 0.0
        %844 = vmatprep.subr.mxu0 0.0
        %845 = vmatpush1.msra.mxu0 0.0
        %846 = vmatprep.subr.mxu0 0.0
        %847 = vmatpush1.msra.mxu0 0.0
        %848 = vmatprep.subr.mxu0 0.0
        %849 = vmatpush1.msra.mxu0 0.0
        %850 = vmatprep.subr.mxu0 0.0
        %851 = vmatpush1.msra.mxu0 0.0
        %852 = vmatprep.subr.mxu0 0.0
        %853 = vmatpush1.msra.mxu0 0.0
        %854 = vmatprep.subr.mxu0 0.0
        %855 = vmatpush1.msra.mxu0 0.0
        %856 = vmatprep.subr.mxu0 0.0
        %857 = vmatpush1.msra.mxu0 0.0
        %858 = vmatprep.subr.mxu0 0.0
        %859 = vmatpush1.msra.mxu0 0.0
        %860 = vmatprep.subr.mxu0 0.0
        %861 = vmatpush1.msra.mxu0 0.0
        %862 = vmatprep.subr.mxu0 0.0
        %863 = vmatpush1.msra.mxu0 0.0
        %864 = vmatprep.subr.mxu0 0.0
        %865 = vmatpush1.msra.mxu0 0.0
        %866 = vmatprep.subr.mxu0 0.0
        %867 = vmatpush1.msra.mxu0 0.0
        %868 = vmatprep.subr.mxu0 0.0
        %869 = vmatpush1.msra.mxu0 0.0
        %870 = vmatprep.subr.mxu0 0.0
        %871 = vmatpush1.msra.mxu0 0.0
        %872 = vmatprep.subr.mxu0 0.0
        %873 = vmatpush1.msra.mxu0 0.0
        %874 = vmatprep.subr.mxu0 0.0
        %875 = vmatpush1.msra.mxu0 0.0
        %876 = vmatprep.subr.mxu0 0.0
        %877 = vmatpush1.msra.mxu0 0.0
        %878 = vmatprep.subr.mxu0 0.0
        %879 = vmatpush1.msra.mxu0 0.0
        %880 = vmatprep.subr.mxu0 0.0
        %881 = vmatpush1.msra.mxu0 0.0
        %882 = vmatprep.subr.mxu0 0.0
        %883 = vmatpush1.msra.mxu0 0.0
        %884 = vmatprep.mubr.f32.mxu0 0.0
        %885 = vmatmul.mubr.f32.gmra.mrb[0].mxu0 %v796
        %v886 = vpop.f32.mrb[0].mxu0
        %v887 = vadd.f32 %v777, %v886
        %v888 = vpop.f32.mrb[0].mxu0
        %v889 = vadd.f32 %v777, %v888
        %890 = vmatprep.mubr.f32.mxu0 0.0
        %891 = vmatmul.mubr.f32.gmra.mrb[0].mxu0 %v799
        %v892 = vpop.f32.mrb[0].mxu0
        %v893 = vadd.f32 %v782, %v892
        %v894 = vpop.f32.mrb[0].mxu0
        %v895 = vadd.f32 %v782, %v894
        %896 = vmatprep.mubr.f32.mxu0 0.0
        %897 = vmatmul.mubr.f32.gmra.mrb[0].mxu0 %v802
        %v898 = vpop.f32.mrb[0].mxu0
        %v899 = vadd.f32 %v787, %v898
        %v900 = vpop.f32.mrb[0].mxu0
        %v901 = vadd.f32 %v787, %v900
        %902 = vmatprep.mubr.f32.mxu0 0.0
        %903 = vmatmul.mubr.f32.gmra.mrb[0].mxu0 %v805
        %v904 = vpop.f32.mrb[0].mxu0
        %v905 = vadd.f32 %v792, %v904
        %v906 = vpop.f32.mrb[0].mxu0
        %v907 = vadd.f32 %v792, %v906
        %908 = vdwg.mxu0
        %909 = vmatprep.subr.mxu0 %v761
        %910 = vmatpush1.msra.mxu0 %v760
        %911 = vmatprep.subr.mxu0 %v818
        %912 = vmatpush1.msra.mxu0 %v815
        %913 = vmatprep.subr.mxu0 0.0
        %914 = vmatpush1.msra.mxu0 0.0
        %915 = vmatprep.subr.mxu0 0.0
        %916 = vmatpush1.msra.mxu0 0.0
        %917 = vmatprep.subr.mxu0 0.0
        %918 = vmatpush1.msra.mxu0 0.0
        %919 = vmatprep.subr.mxu0 0.0
        %920 = vmatpush1.msra.mxu0 0.0
        %921 = vmatprep.subr.mxu0 0.0
        %922 = vmatpush1.msra.mxu0 0.0
        %923 = vmatprep.subr.mxu0 0.0
        %924 = vmatpush1.msra.mxu0 0.0
        %925 = vmatprep.subr.mxu0 0.0
        %926 = vmatpush1.msra.mxu0 0.0
        %927 = vmatprep.subr.mxu0 0.0
        %928 = vmatpush1.msra.mxu0 0.0
        %929 = vmatprep.subr.mxu0 0.0
        %930 = vmatpush1.msra.mxu0 0.0
        %931 = vmatprep.subr.mxu0 0.0
        %932 = vmatpush1.msra.mxu0 0.0
        %933 = vmatprep.subr.mxu0 0.0
        %934 = vmatpush1.msra.mxu0 0.0
        %935 = vmatprep.subr.mxu0 0.0
        %936 = vmatpush1.msra.mxu0 0.0
        %937 = vmatprep.subr.mxu0 0.0
        %938 = vmatpush1.msra.mxu0 0.0
        %939 = vmatprep.subr.mxu0 0.0
        %940 = vmatpush1.msra.mxu0 0.0
        %941 = vmatprep.subr.mxu0 0.0
        %942 = vmatpush1.msra.mxu0 0.0
        %943 = vmatprep.subr.mxu0 0.0
        %944 = vmatpush1.msra.mxu0 0.0
        %945 = vmatprep.subr.mxu0 0.0
        %946 = vmatpush1.msra.mxu0 0.0
        %947 = vmatprep.subr.mxu0 0.0
        %948 = vmatpush1.msra.mxu0 0.0
        %949 = vmatprep.subr.mxu0 0.0
        %950 = vmatpush1.msra.mxu0 0.0
        %951 = vmatprep.subr.mxu0 0.0
        %952 = vmatpush1.msra.mxu0 0.0
        %953 = vmatprep.subr.mxu0 0.0
        %954 = vmatpush1.msra.mxu0 0.0
        %955 = vmatprep.subr.mxu0 0.0
        %956 = vmatpush1.msra.mxu0 0.0
        %957 = vmatprep.subr.mxu0 0.0
        %958 = vmatpush1.msra.mxu0 0.0
        %959 = vmatprep.subr.mxu0 0.0
        %960 = vmatpush1.msra.mxu0 0.0
        %961 = vmatprep.subr.mxu0 0.0
        %962 = vmatpush1.msra.mxu0 0.0
        %963 = vmatprep.subr.mxu0 0.0
        %964 = vmatpush1.msra.mxu0 0.0
        %965 = vmatprep.subr.mxu0 0.0
        %966 = vmatpush1.msra.mxu0 0.0
        %967 = vmatprep.subr.mxu0 0.0
        %968 = vmatpush1.msra.mxu0 0.0
        %969 = vmatprep.subr.mxu0 0.0
        %970 = vmatpush1.msra.mxu0 0.0
        %971 = vmatprep.subr.mxu0 0.0
        %972 = vmatpush1.msra.mxu0 0.0
        %973 = vmatprep.mubr.f32.mxu0 0.0
        %974 = vmatmul.mubr.f32.gmra.mrb[0].mxu0 %v796
        %v975 = vpop.f32.mrb[0].mxu0
        %v976 = vadd.f32 %v777, %v975
        %v977 = vpop.f32.mrb[0].mxu0
        %v978 = vadd.f32 %v777, %v977
        %979 = vmatprep.mubr.f32.mxu0 0.0
        %980 = vmatmul.mubr.f32.gmra.mrb[0].mxu0 %v799
        %v981 = vpop.f32.mrb[0].mxu0
        %v982 = vadd.f32 %v782, %v981
        %v983 = vpop.f32.mrb[0].mxu0
        %v984 = vadd.f32 %v782, %v983
        %985 = vmatprep.mubr.f32.mxu0 0.0
        %986 = vmatmul.mubr.f32.gmra.mrb[0].mxu0 %v802
        %v987 = vpop.f32.mrb[0].mxu0
        %v988 = vadd.f32 %v787, %v987
        %v989 = vpop.f32.mrb[0].mxu0
        %v990 = vadd.f32 %v787, %v989
        %991 = vmatprep.mubr.f32.mxu0 0.0
        %992 = vmatmul.mubr.f32.gmra.mrb[0].mxu0 %v805
        %v993 = vpop.f32.mrb[0].mxu0
        %v994 = vadd.f32 %v792, %v993
        %v995 = vpop.f32.mrb[0].mxu0
        %v996 = vadd.f32 %v792, %v995
        %997 = vdwg.mxu0
        %v998 = vmax.f32 %v887, 0.0
        %v999 = vmax.f32 %v889, 0.0
        %v1000 = vmax.f32 %v976, 0.0
        %v1001 = vmax.f32 %v978, 0.0
        %v1002 = vmax.f32 %v893, 0.0
        %v1003 = vmax.f32 %v895, 0.0
        %v1004 = vmax.f32 %v982, 0.0
        %v1005 = vmax.f32 %v984, 0.0
        %v1006 = vmax.f32 %v899, 0.0
        %v1007 = vmax.f32 %v901, 0.0
        %v1008 = vmax.f32 %v988, 0.0
        %v1009 = vmax.f32 %v990, 0.0
        %v1010 = vmax.f32 %v905, 0.0
        %v1011 = vmax.f32 %v907, 0.0
        %v1012 = vmax.f32 %v994, 0.0
        %v1013 = vmax.f32 %v996, 0.0
        %v1014 = vld [vmem:[%s3] sm:$0xff]
        %v1015 = vld [vmem:[%s3 + $0x8] sm:$0xff]
        %v1016 = vld [vmem:[%s3 + $0x10] sm:$0xff]
        %v1017 = vld [vmem:[%s3 + $0x18] sm:$0xff]
        %v1018 = vld [vmem:[%s4] sm:$0xff]
        %v1019 = vld [vmem:[%s4 + $0x8] sm:$0xff]
        %v1020 = vld [vmem:[%s4 + $0x10] sm:$0xff]
        %v1021 = vld [vmem:[%s4 + $0x18] sm:$0xff]
        %1023 = vset.pattern.permute.xlu0 0
        %1024 = vperm.xlu0 %1023, %v1018
        %v1025 = vpop.permute.xlu0 %1024
        %1028 = vset.pattern.permute.xlu0 0
        %1029 = vperm.xlu0 %1028, %v1019
        %v1030 = vpop.permute.xlu0 %1029
        %1033 = vset.pattern.permute.xlu0 0
        %1034 = vperm.xlu0 %1033, %v1020
        %v1035 = vpop.permute.xlu0 %1034
        %1038 = vset.pattern.permute.xlu0 0
        %1039 = vperm.xlu0 %1038, %v1021
        %v1040 = vpop.permute.xlu0 %1039
        %vm1042 = vcmask 261120
        %v1044 = vsel %vm1042, %v1014, 0
        %v1047 = vsel %vm1042, %v1015, 0
        %v1050 = vsel %vm1042, %v1016, 0
        %v1053 = vsel %vm1042, %v1017, 0
        %1055 = vmatprep.subr.mxu0 %v999
        %1056 = vmatpush1.msra.mxu0 %v998
        %1057 = vmatprep.subr.mxu0 %v1003
        %1058 = vmatpush1.msra.mxu0 %v1002
        %1059 = vmatprep.subr.mxu0 %v1007
        %1060 = vmatpush1.msra.mxu0 %v1006
        %1061 = vmatprep.subr.mxu0 %v1011
        %1062 = vmatpush1.msra.mxu0 %v1010
        %1063 = vmatprep.subr.mxu0 0.0
        %1064 = vmatpush1.msra.mxu0 0.0
        %1065 = vmatprep.subr.mxu0 0.0
        %1066 = vmatpush1.msra.mxu0 0.0
        %1067 = vmatprep.subr.mxu0 0.0
        %1068 = vmatpush1.msra.mxu0 0.0
        %1069 = vmatprep.subr.mxu0 0.0
        %1070 = vmatpush1.msra.mxu0 0.0
        %1071 = vmatprep.subr.mxu0 0.0
        %1072 = vmatpush1.msra.mxu0 0.0
        %1073 = vmatprep.subr.mxu0 0.0
        %1074 = vmatpush1.msra.mxu0 0.0
        %1075 = vmatprep.subr.mxu0 0.0
        %1076 = vmatpush1.msra.mxu0 0.0
        %1077 = vmatprep.subr.mxu0 0.0
        %1078 = vmatpush1.msra.mxu0 0.0
        %1079 = vmatprep.subr.mxu0 0.0
        %1080 = vmatpush1.msra.mxu0 0.0
        %1081 = vmatprep.subr.mxu0 0.0
        %1082 = vmatpush1.msra.mxu0 0.0
        %1083 = vmatprep.subr.mxu0 0.0
        %1084 = vmatpush1.msra.mxu0 0.0
        %1085 = vmatprep.subr.mxu0 0.0
        %1086 = vmatpush1.msra.mxu0 0.0
        %1087 = vmatprep.subr.mxu0 0.0
        %1088 = vmatpush1.msra.mxu0 0.0
        %1089 = vmatprep.subr.mxu0 0.0
        %1090 = vmatpush1.msra.mxu0 0.0
        %1091 = vmatprep.subr.mxu0 0.0
        %1092 = vmatpush1.msra.mxu0 0.0
        %1093 = vmatprep.subr.mxu0 0.0
        %1094 = vmatpush1.msra.mxu0 0.0
        %1095 = vmatprep.subr.mxu0 0.0
        %1096 = vmatpush1.msra.mxu0 0.0
        %1097 = vmatprep.subr.mxu0 0.0
        %1098 = vmatpush1.msra.mxu0 0.0
        %1099 = vmatprep.subr.mxu0 0.0
        %1100 = vmatpush1.msra.mxu0 0.0
        %1101 = vmatprep.subr.mxu0 0.0
        %1102 = vmatpush1.msra.mxu0 0.0
        %1103 = vmatprep.subr.mxu0 0.0
        %1104 = vmatpush1.msra.mxu0 0.0
        %1105 = vmatprep.subr.mxu0 0.0
        %1106 = vmatpush1.msra.mxu0 0.0
        %1107 = vmatprep.subr.mxu0 0.0
        %1108 = vmatpush1.msra.mxu0 0.0
        %1109 = vmatprep.subr.mxu0 0.0
        %1110 = vmatpush1.msra.mxu0 0.0
        %1111 = vmatprep.subr.mxu0 0.0
        %1112 = vmatpush1.msra.mxu0 0.0
        %1113 = vmatprep.subr.mxu0 0.0
        %1114 = vmatpush1.msra.mxu0 0.0
        %1115 = vmatprep.subr.mxu0 0.0
        %1116 = vmatpush1.msra.mxu0 0.0
        %1117 = vmatprep.subr.mxu0 0.0
        %1118 = vmatpush1.msra.mxu0 0.0
        %1119 = vmatprep.mubr.f32.mxu0 0.0
        %1120 = vmatmul.mubr.f32.gmra.mrb[0].mxu0 %v1044
        %v1121 = vpop.f32.mrb[0].mxu0
        %v1122 = vadd.f32 %v1025, %v1121
        %v1123 = vpop.f32.mrb[0].mxu0
        %v1124 = vadd.f32 %v1025, %v1123
        %1125 = vmatprep.mubr.f32.mxu0 0.0
        %1126 = vmatmul.mubr.f32.gmra.mrb[0].mxu0 %v1047
        %v1127 = vpop.f32.mrb[0].mxu0
        %v1128 = vadd.f32 %v1030, %v1127
        %v1129 = vpop.f32.mrb[0].mxu0
        %v1130 = vadd.f32 %v1030, %v1129
        %1131 = vmatprep.mubr.f32.mxu0 0.0
        %1132 = vmatmul.mubr.f32.gmra.mrb[0].mxu0 %v1050
        %v1133 = vpop.f32.mrb[0].mxu0
        %v1134 = vadd.f32 %v1035, %v1133
        %v1135 = vpop.f32.mrb[0].mxu0
        %v1136 = vadd.f32 %v1035, %v1135
        %1137 = vmatprep.mubr.f32.mxu0 0.0
        %1138 = vmatmul.mubr.f32.gmra.mrb[0].mxu0 %v1053
        %v1139 = vpop.f32.mrb[0].mxu0
        %v1140 = vadd.f32 %v1040, %v1139
        %v1141 = vpop.f32.mrb[0].mxu0
        %v1142 = vadd.f32 %v1040, %v1141
        %1143 = vdwg.mxu0
        %1144 = vmatprep.subr.mxu0 %v1001
        %1145 = vmatpush1.msra.mxu0 %v1000
        %1146 = vmatprep.subr.mxu0 %v1005
        %1147 = vmatpush1.msra.mxu0 %v1004
        %1148 = vmatprep.subr.mxu0 %v1009
        %1149 = vmatpush1.msra.mxu0 %v1008
        %1150 = vmatprep.subr.mxu0 %v1013
        %1151 = vmatpush1.msra.mxu0 %v1012
        %1152 = vmatprep.subr.mxu0 0.0
        %1153 = vmatpush1.msra.mxu0 0.0
        %1154 = vmatprep.subr.mxu0 0.0
        %1155 = vmatpush1.msra.mxu0 0.0
        %1156 = vmatprep.subr.mxu0 0.0
        %1157 = vmatpush1.msra.mxu0 0.0
        %1158 = vmatprep.subr.mxu0 0.0
        %1159 = vmatpush1.msra.mxu0 0.0
        %1160 = vmatprep.subr.mxu0 0.0
        %1161 = vmatpush1.msra.mxu0 0.0
        %1162 = vmatprep.subr.mxu0 0.0
        %1163 = vmatpush1.msra.mxu0 0.0
        %1164 = vmatprep.subr.mxu0 0.0
        %1165 = vmatpush1.msra.mxu0 0.0
        %1166 = vmatprep.subr.mxu0 0.0
        %1167 = vmatpush1.msra.mxu0 0.0
        %1168 = vmatprep.subr.mxu0 0.0
        %1169 = vmatpush1.msra.mxu0 0.0
        %1170 = vmatprep.subr.mxu0 0.0
        %1171 = vmatpush1.msra.mxu0 0.0
        %1172 = vmatprep.subr.mxu0 0.0
        %1173 = vmatpush1.msra.mxu0 0.0
        %1174 = vmatprep.subr.mxu0 0.0
        %1175 = vmatpush1.msra.mxu0 0.0
        %1176 = vmatprep.subr.mxu0 0.0
        %1177 = vmatpush1.msra.mxu0 0.0
        %1178 = vmatprep.subr.mxu0 0.0
        %1179 = vmatpush1.msra.mxu0 0.0
        %1180 = vmatprep.subr.mxu0 0.0
        %1181 = vmatpush1.msra.mxu0 0.0
        %1182 = vmatprep.subr.mxu0 0.0
        %1183 = vmatpush1.msra.mxu0 0.0
        %1184 = vmatprep.subr.mxu0 0.0
        %1185 = vmatpush1.msra.mxu0 0.0
        %1186 = vmatprep.subr.mxu0 0.0
        %1187 = vmatpush1.msra.mxu0 0.0
        %1188 = vmatprep.subr.mxu0 0.0
        %1189 = vmatpush1.msra.mxu0 0.0
        %1190 = vmatprep.subr.mxu0 0.0
        %1191 = vmatpush1.msra.mxu0 0.0
        %1192 = vmatprep.subr.mxu0 0.0
        %1193 = vmatpush1.msra.mxu0 0.0
        %1194 = vmatprep.subr.mxu0 0.0
        %1195 = vmatpush1.msra.mxu0 0.0
        %1196 = vmatprep.subr.mxu0 0.0
        %1197 = vmatpush1.msra.mxu0 0.0
        %1198 = vmatprep.subr.mxu0 0.0
        %1199 = vmatpush1.msra.mxu0 0.0
        %1200 = vmatprep.subr.mxu0 0.0
        %1201 = vmatpush1.msra.mxu0 0.0
        %1202 = vmatprep.subr.mxu0 0.0
        %1203 = vmatpush1.msra.mxu0 0.0
        %1204 = vmatprep.subr.mxu0 0.0
        %1205 = vmatpush1.msra.mxu0 0.0
        %1206 = vmatprep.subr.mxu0 0.0
        %1207 = vmatpush1.msra.mxu0 0.0
        %1208 = vmatprep.mubr.f32.mxu0 0.0
        %1209 = vmatmul.mubr.f32.gmra.mrb[0].mxu0 %v1044
        %v1210 = vpop.f32.mrb[0].mxu0
        %v1211 = vadd.f32 %v1025, %v1210
        %v1212 = vpop.f32.mrb[0].mxu0
        %v1213 = vadd.f32 %v1025, %v1212
        %1214 = vmatprep.mubr.f32.mxu0 0.0
        %1215 = vmatmul.mubr.f32.gmra.mrb[0].mxu0 %v1047
        %v1216 = vpop.f32.mrb[0].mxu0
        %v1217 = vadd.f32 %v1030, %v1216
        %v1218 = vpop.f32.mrb[0].mxu0
        %v1219 = vadd.f32 %v1030, %v1218
        %1220 = vmatprep.mubr.f32.mxu0 0.0
        %1221 = vmatmul.mubr.f32.gmra.mrb[0].mxu0 %v1050
        %v1222 = vpop.f32.mrb[0].mxu0
        %v1223 = vadd.f32 %v1035, %v1222
        %v1224 = vpop.f32.mrb[0].mxu0
        %v1225 = vadd.f32 %v1035, %v1224
        %1226 = vmatprep.mubr.f32.mxu0 0.0
        %1227 = vmatmul.mubr.f32.gmra.mrb[0].mxu0 %v1053
        %v1228 = vpop.f32.mrb[0].mxu0
        %v1229 = vadd.f32 %v1040, %v1228
        %v1230 = vpop.f32.mrb[0].mxu0
        %v1231 = vadd.f32 %v1040, %v1230
        %1232 = vdwg.mxu0
        %v1233 = vmax.f32 %v1122, 0.0
        %v1234 = vmax.f32 %v1124, 0.0
        %v1235 = vmax.f32 %v1211, 0.0
        %v1236 = vmax.f32 %v1213, 0.0
        %v1237 = vmax.f32 %v1128, 0.0
        %v1238 = vmax.f32 %v1130, 0.0
        %v1239 = vmax.f32 %v1217, 0.0
        %v1240 = vmax.f32 %v1219, 0.0
        %v1241 = vmax.f32 %v1134, 0.0
        %v1242 = vmax.f32 %v1136, 0.0
        %v1243 = vmax.f32 %v1223, 0.0
        %v1244 = vmax.f32 %v1225, 0.0
        %v1245 = vmax.f32 %v1140, 0.0
        %v1246 = vmax.f32 %v1142, 0.0
        %v1247 = vmax.f32 %v1229, 0.0
        %v1248 = vmax.f32 %v1231, 0.0
        %v1249 = vld [vmem:[%s5] sm:$0xff]
        %v1250 = vld [vmem:[%s6] sm:$0xff]
        %1252 = vset.pattern.permute.xlu0 0
        %1253 = vperm.xlu0 %1252, %v1250
        %v1254 = vpop.permute.xlu0 %1253
        %v1257 = vsel %vm1042, %v1249, 0
        %1259 = vmatprep.subr.mxu0 %v1234
        %1260 = vmatpush1.msra.mxu0 %v1233
        %1261 = vmatprep.subr.mxu0 %v1238
        %1262 = vmatpush1.msra.mxu0 %v1237
        %1263 = vmatprep.subr.mxu0 %v1242
        %1264 = vmatpush1.msra.mxu0 %v1241
        %1265 = vmatprep.subr.mxu0 %v1246
        %1266 = vmatpush1.msra.mxu0 %v1245
        %1267 = vmatprep.subr.mxu0 0.0
        %1268 = vmatpush1.msra.mxu0 0.0
        %1269 = vmatprep.subr.mxu0 0.0
        %1270 = vmatpush1.msra.mxu0 0.0
        %1271 = vmatprep.subr.mxu0 0.0
        %1272 = vmatpush1.msra.mxu0 0.0
        %1273 = vmatprep.subr.mxu0 0.0
        %1274 = vmatpush1.msra.mxu0 0.0
        %1275 = vmatprep.subr.mxu0 0.0
        %1276 = vmatpush1.msra.mxu0 0.0
        %1277 = vmatprep.subr.mxu0 0.0
        %1278 = vmatpush1.msra.mxu0 0.0
        %1279 = vmatprep.subr.mxu0 0.0
        %1280 = vmatpush1.msra.mxu0 0.0
        %1281 = vmatprep.subr.mxu0 0.0
        %1282 = vmatpush1.msra.mxu0 0.0
        %1283 = vmatprep.subr.mxu0 0.0
        %1284 = vmatpush1.msra.mxu0 0.0
        %1285 = vmatprep.subr.mxu0 0.0
        %1286 = vmatpush1.msra.mxu0 0.0
        %1287 = vmatprep.subr.mxu0 0.0
        %1288 = vmatpush1.msra.mxu0 0.0
        %1289 = vmatprep.subr.mxu0 0.0
        %1290 = vmatpush1.msra.mxu0 0.0
        %1291 = vmatprep.subr.mxu0 0.0
        %1292 = vmatpush1.msra.mxu0 0.0
        %1293 = vmatprep.subr.mxu0 0.0
        %1294 = vmatpush1.msra.mxu0 0.0
        %1295 = vmatprep.subr.mxu0 0.0
        %1296 = vmatpush1.msra.mxu0 0.0
        %1297 = vmatprep.subr.mxu0 0.0
        %1298 = vmatpush1.msra.mxu0 0.0
        %1299 = vmatprep.subr.mxu0 0.0
        %1300 = vmatpush1.msra.mxu0 0.0
        %1301 = vmatprep.subr.mxu0 0.0
        %1302 = vmatpush1.msra.mxu0 0.0
        %1303 = vmatprep.subr.mxu0 0.0
        %1304 = vmatpush1.msra.mxu0 0.0
        %1305 = vmatprep.subr.mxu0 0.0
        %1306 = vmatpush1.msra.mxu0 0.0
        %1307 = vmatprep.subr.mxu0 0.0
        %1308 = vmatpush1.msra.mxu0 0.0
        %1309 = vmatprep.subr.mxu0 0.0
        %1310 = vmatpush1.msra.mxu0 0.0
        %1311 = vmatprep.subr.mxu0 0.0
        %1312 = vmatpush1.msra.mxu0 0.0
        %1313 = vmatprep.subr.mxu0 0.0
        %1314 = vmatpush1.msra.mxu0 0.0
        %1315 = vmatprep.subr.mxu0 0.0
        %1316 = vmatpush1.msra.mxu0 0.0
        %1317 = vmatprep.subr.mxu0 0.0
        %1318 = vmatpush1.msra.mxu0 0.0
        %1319 = vmatprep.subr.mxu0 0.0
        %1320 = vmatpush1.msra.mxu0 0.0
        %1321 = vmatprep.subr.mxu0 0.0
        %1322 = vmatpush1.msra.mxu0 0.0
        %1323 = vmatprep.mubr.f32.mxu0 0.0
        %1324 = vmatmul.mubr.f32.gmra.mrb[0].mxu0 %v1257
        %v1325 = vpop.f32.mrb[0].mxu0
        %v1326 = vadd.f32 %v1254, %v1325
        %v1327 = vpop.f32.mrb[0].mxu0
        %v1328 = vadd.f32 %v1254, %v1327
        %1329 = vdwg.mxu0
        %1330 = vmatprep.subr.mxu0 %v1236
        %1331 = vmatpush1.msra.mxu0 %v1235
        %1332 = vmatprep.subr.mxu0 %v1240
        %1333 = vmatpush1.msra.mxu0 %v1239
        %1334 = vmatprep.subr.mxu0 %v1244
        %1335 = vmatpush1.msra.mxu0 %v1243
        %1336 = vmatprep.subr.mxu0 %v1248
        %1337 = vmatpush1.msra.mxu0 %v1247
        %1338 = vmatprep.subr.mxu0 0.0
        %1339 = vmatpush1.msra.mxu0 0.0
        %1340 = vmatprep.subr.mxu0 0.0
        %1341 = vmatpush1.msra.mxu0 0.0
        %1342 = vmatprep.subr.mxu0 0.0
        %1343 = vmatpush1.msra.mxu0 0.0
        %1344 = vmatprep.subr.mxu0 0.0
        %1345 = vmatpush1.msra.mxu0 0.0
        %1346 = vmatprep.subr.mxu0 0.0
        %1347 = vmatpush1.msra.mxu0 0.0
        %1348 = vmatprep.subr.mxu0 0.0
        %1349 = vmatpush1.msra.mxu0 0.0
        %1350 = vmatprep.subr.mxu0 0.0
        %1351 = vmatpush1.msra.mxu0 0.0
        %1352 = vmatprep.subr.mxu0 0.0
        %1353 = vmatpush1.msra.mxu0 0.0
        %1354 = vmatprep.subr.mxu0 0.0
        %1355 = vmatpush1.msra.mxu0 0.0
        %1356 = vmatprep.subr.mxu0 0.0
        %1357 = vmatpush1.msra.mxu0 0.0
        %1358 = vmatprep.subr.mxu0 0.0
        %1359 = vmatpush1.msra.mxu0 0.0
        %1360 = vmatprep.subr.mxu0 0.0
        %1361 = vmatpush1.msra.mxu0 0.0
        %1362 = vmatprep.subr.mxu0 0.0
        %1363 = vmatpush1.msra.mxu0 0.0
        %1364 = vmatprep.subr.mxu0 0.0
        %1365 = vmatpush1.msra.mxu0 0.0
        %1366 = vmatprep.subr.mxu0 0.0
        %1367 = vmatpush1.msra.mxu0 0.0
        %1368 = vmatprep.subr.mxu0 0.0
        %1369 = vmatpush1.msra.mxu0 0.0
        %1370 = vmatprep.subr.mxu0 0.0
        %1371 = vmatpush1.msra.mxu0 0.0
        %1372 = vmatprep.subr.mxu0 0.0
        %1373 = vmatpush1.msra.mxu0 0.0
        %1374 = vmatprep.subr.mxu0 0.0
        %1375 = vmatpush1.msra.mxu0 0.0
        %1376 = vmatprep.subr.mxu0 0.0
        %1377 = vmatpush1.msra.mxu0 0.0
        %1378 = vmatprep.subr.mxu0 0.0
        %1379 = vmatpush1.msra.mxu0 0.0
        %1380 = vmatprep.subr.mxu0 0.0
        %1381 = vmatpush1.msra.mxu0 0.0
        %1382 = vmatprep.subr.mxu0 0.0
        %1383 = vmatpush1.msra.mxu0 0.0
        %1384 = vmatprep.subr.mxu0 0.0
        %1385 = vmatpush1.msra.mxu0 0.0
        %1386 = vmatprep.subr.mxu0 0.0
        %1387 = vmatpush1.msra.mxu0 0.0
        %1388 = vmatprep.subr.mxu0 0.0
        %1389 = vmatpush1.msra.mxu0 0.0
        %1390 = vmatprep.subr.mxu0 0.0
        %1391 = vmatpush1.msra.mxu0 0.0
        %1392 = vmatprep.subr.mxu0 0.0
        %1393 = vmatpush1.msra.mxu0 0.0
        %1394 = vmatprep.mubr.f32.mxu0 0.0
        %1395 = vmatmul.mubr.f32.gmra.mrb[0].mxu0 %v1257
        %v1396 = vpop.f32.mrb[0].mxu0
        %v1397 = vadd.f32 %v1254, %v1396
        %v1398 = vpop.f32.mrb[0].mxu0
        %v1399 = vadd.f32 %v1254, %v1398
        %1400 = vdwg.mxu0
        %v1401 = vmax.f32 %v1326, 0.0
        %v1402 = vmax.f32 %v1328, 0.0
        %v1403 = vmax.f32 %v1397, 0.0
        %v1404 = vmax.f32 %v1399, 0.0
        %v1405 = vld [vmem:[%s7] sm:$0xff]
        %v1406 = vld [vmem:[%s7 + $0x8] sm:$0xf]
        %v1407 = vld [vmem:[%s8] sm:$0xff]
        %v1408 = vld [vmem:[%s8 + $0x8] sm:$0xf]
        %1410 = vset.pattern.permute.xlu0 0
        %1411 = vperm.xlu0 %1410, %v1407
        %v1412 = vpop.permute.xlu0 %1411
        %1415 = vset.pattern.permute.xlu0 0
        %1416 = vperm.xlu0 %1415, %v1408
        %v1417 = vpop.permute.xlu0 %1416
        %vm1419 = vcmask 64512
        %v1421 = vsel %vm1419, %v1405, 0
        %v1424 = vsel %vm1419, %v1406, 0
        %1426 = vmatprep.subr.mxu0 %v1402
        %1427 = vmatpush1.msra.mxu0 %v1401
        %1428 = vmatprep.subr.mxu0 0.0
        %1429 = vmatpush1.msra.mxu0 0.0
        %1430 = vmatprep.subr.mxu0 0.0
        %1431 = vmatpush1.msra.mxu0 0.0
        %1432 = vmatprep.subr.mxu0 0.0
        %1433 = vmatpush1.msra.mxu0 0.0
        %1434 = vmatprep.subr.mxu0 0.0
        %1435 = vmatpush1.msra.mxu0 0.0
        %1436 = vmatprep.subr.mxu0 0.0
        %1437 = vmatpush1.msra.mxu0 0.0
        %1438 = vmatprep.subr.mxu0 0.0
        %1439 = vmatpush1.msra.mxu0 0.0
        %1440 = vmatprep.subr.mxu0 0.0
        %1441 = vmatpush1.msra.mxu0 0.0
        %1442 = vmatprep.subr.mxu0 0.0
        %1443 = vmatpush1.msra.mxu0 0.0
        %1444 = vmatprep.subr.mxu0 0.0
        %1445 = vmatpush1.msra.mxu0 0.0
        %1446 = vmatprep.subr.mxu0 0.0
        %1447 = vmatpush1.msra.mxu0 0.0
        %1448 = vmatprep.subr.mxu0 0.0
        %1449 = vmatpush1.msra.mxu0 0.0
        %1450 = vmatprep.subr.mxu0 0.0
        %1451 = vmatpush1.msra.mxu0 0.0
        %1452 = vmatprep.subr.mxu0 0.0
        %1453 = vmatpush1.msra.mxu0 0.0
        %1454 = vmatprep.subr.mxu0 0.0
        %1455 = vmatpush1.msra.mxu0 0.0
        %1456 = vmatprep.subr.mxu0 0.0
        %1457 = vmatpush1.msra.mxu0 0.0
        %1458 = vmatprep.subr.mxu0 0.0
        %1459 = vmatpush1.msra.mxu0 0.0
        %1460 = vmatprep.subr.mxu0 0.0
        %1461 = vmatpush1.msra.mxu0 0.0
        %1462 = vmatprep.subr.mxu0 0.0
        %1463 = vmatpush1.msra.mxu0 0.0
        %1464 = vmatprep.subr.mxu0 0.0
        %1465 = vmatpush1.msra.mxu0 0.0
        %1466 = vmatprep.subr.mxu0 0.0
        %1467 = vmatpush1.msra.mxu0 0.0
        %1468 = vmatprep.subr.mxu0 0.0
        %1469 = vmatpush1.msra.mxu0 0.0
        %1470 = vmatprep.subr.mxu0 0.0
        %1471 = vmatpush1.msra.mxu0 0.0
        %1472 = vmatprep.subr.mxu0 0.0
        %1473 = vmatpush1.msra.mxu0 0.0
        %1474 = vmatprep.subr.mxu0 0.0
        %1475 = vmatpush1.msra.mxu0 0.0
        %1476 = vmatprep.subr.mxu0 0.0
        %1477 = vmatpush1.msra.mxu0 0.0
        %1478 = vmatprep.subr.mxu0 0.0
        %1479 = vmatpush1.msra.mxu0 0.0
        %1480 = vmatprep.subr.mxu0 0.0
        %1481 = vmatpush1.msra.mxu0 0.0
        %1482 = vmatprep.subr.mxu0 0.0
        %1483 = vmatpush1.msra.mxu0 0.0
        %1484 = vmatprep.subr.mxu0 0.0
        %1485 = vmatpush1.msra.mxu0 0.0
        %1486 = vmatprep.subr.mxu0 0.0
        %1487 = vmatpush1.msra.mxu0 0.0
        %1488 = vmatprep.subr.mxu0 0.0
        %1489 = vmatpush1.msra.mxu0 0.0
        %1490 = vmatprep.mubr.f32.mxu0 0.0
        %1491 = vmatmul.mubr.f32.gmra.mrb[0].mxu0 %v1421
        %v1492 = vpop.f32.mrb[0].mxu0
        %v1493 = vadd.f32 %v1412, %v1492
        %v1494 = vpop.f32.mrb[0].mxu0
        %v1495 = vadd.f32 %v1412, %v1494
        %1496 = vmatprep.mubr.f32.mxu0 0.0
        %1497 = vmatmul.mubr.f32.gmra.mrb[0].mxu0 %v1424
        %v1498 = vpop.f32.mrb[0].mxu0
        %v1499 = vadd.f32 %v1417, %v1498
        %v1500 = vpop.f32.mrb[0].mxu0
        %v1501 = vadd.f32 %v1417, %v1500
        %1502 = vdwg.mxu0
        %1503 = vmatprep.subr.mxu0 %v1404
        %1504 = vmatpush1.msra.mxu0 %v1403
        %1505 = vmatprep.subr.mxu0 0.0
        %1506 = vmatpush1.msra.mxu0 0.0
        %1507 = vmatprep.subr.mxu0 0.0
        %1508 = vmatpush1.msra.mxu0 0.0
        %1509 = vmatprep.subr.mxu0 0.0
        %1510 = vmatpush1.msra.mxu0 0.0
        %1511 = vmatprep.subr.mxu0 0.0
        %1512 = vmatpush1.msra.mxu0 0.0
        %1513 = vmatprep.subr.mxu0 0.0
        %1514 = vmatpush1.msra.mxu0 0.0
        %1515 = vmatprep.subr.mxu0 0.0
        %1516 = vmatpush1.msra.mxu0 0.0
        %1517 = vmatprep.subr.mxu0 0.0
        %1518 = vmatpush1.msra.mxu0 0.0
        %1519 = vmatprep.subr.mxu0 0.0
        %1520 = vmatpush1.msra.mxu0 0.0
        %1521 = vmatprep.subr.mxu0 0.0
        %1522 = vmatpush1.msra.mxu0 0.0
        %1523 = vmatprep.subr.mxu0 0.0
        %1524 = vmatpush1.msra.mxu0 0.0
        %1525 = vmatprep.subr.mxu0 0.0
        %1526 = vmatpush1.msra.mxu0 0.0
        %1527 = vmatprep.subr.mxu0 0.0
        %1528 = vmatpush1.msra.mxu0 0.0
        %1529 = vmatprep.subr.mxu0 0.0
        %1530 = vmatpush1.msra.mxu0 0.0
        %1531 = vmatprep.subr.mxu0 0.0
        %1532 = vmatpush1.msra.mxu0 0.0
        %1533 = vmatprep.subr.mxu0 0.0
        %1534 = vmatpush1.msra.mxu0 0.0
        %1535 = vmatprep.subr.mxu0 0.0
        %1536 = vmatpush1.msra.mxu0 0.0
        %1537 = vmatprep.subr.mxu0 0.0
        %1538 = vmatpush1.msra.mxu0 0.0
        %1539 = vmatprep.subr.mxu0 0.0
        %1540 = vmatpush1.msra.mxu0 0.0
        %1541 = vmatprep.subr.mxu0 0.0
        %1542 = vmatpush1.msra.mxu0 0.0
        %1543 = vmatprep.subr.mxu0 0.0
        %1544 = vmatpush1.msra.mxu0 0.0
        %1545 = vmatprep.subr.mxu0 0.0
        %1546 = vmatpush1.msra.mxu0 0.0
        %1547 = vmatprep.subr.mxu0 0.0
        %1548 = vmatpush1.msra.mxu0 0.0
        %1549 = vmatprep.subr.mxu0 0.0
        %1550 = vmatpush1.msra.mxu0 0.0
        %1551 = vmatprep.subr.mxu0 0.0
        %1552 = vmatpush1.msra.mxu0 0.0
        %1553 = vmatprep.subr.mxu0 0.0
        %1554 = vmatpush1.msra.mxu0 0.0
        %1555 = vmatprep.subr.mxu0 0.0
        %1556 = vmatpush1.msra.mxu0 0.0
        %1557 = vmatprep.subr.mxu0 0.0
        %1558 = vmatpush1.msra.mxu0 0.0
        %1559 = vmatprep.subr.mxu0 0.0
        %1560 = vmatpush1.msra.mxu0 0.0
        %1561 = vmatprep.subr.mxu0 0.0
        %1562 = vmatpush1.msra.mxu0 0.0
        %1563 = vmatprep.subr.mxu0 0.0
        %1564 = vmatpush1.msra.mxu0 0.0
        %1565 = vmatprep.subr.mxu0 0.0
        %1566 = vmatpush1.msra.mxu0 0.0
        %1567 = vmatprep.mubr.f32.mxu0 0.0
        %1568 = vmatmul.mubr.f32.gmra.mrb[0].mxu0 %v1421
        %v1569 = vpop.f32.mrb[0].mxu0
        %v1570 = vadd.f32 %v1412, %v1569
        %v1571 = vpop.f32.mrb[0].mxu0
        %v1572 = vadd.f32 %v1412, %v1571
        %1573 = vmatprep.mubr.f32.mxu0 0.0
        %1574 = vmatmul.mubr.f32.gmra.mrb[0].mxu0 %v1424
        %v1575 = vpop.f32.mrb[0].mxu0
        %v1576 = vadd.f32 %v1417, %v1575
        %v1577 = vpop.f32.mrb[0].mxu0
        %v1578 = vadd.f32 %v1417, %v1577
        %1579 = vdwg.mxu0
        %v1580 = vpack.c.bf16 %v1499, %v1493
        %v1581 = vpack.c.bf16 %v1501, %v1495
        %v1582 = vpack.c.bf16 %v1576, %v1570
        %v1583 = vpack.c.bf16 %v1578, %v1572
        %v1588 = vunpack.c.l.b16 %v1580
        %v1589 = vunpack.c.l.b16 %v1581
        %v1590 = vunpack.c.l.b16 %v1582
        %v1591 = vunpack.c.l.b16 %v1583
        %v1592 = vunpack.c.h.b16 %v1580
        %v1593 = vunpack.c.h.b16 %v1581
        %v1594 = vunpack.c.h.b16 %v1582
        %v1595 = vunpack.c.h.b16 %v1583
        %v1596 = vpack.c.b16 %v1589, %v1588
        %v1597 = vpack.c.b16 %v1591, %v1590
        %v1598 = vpack.c.b16 %v1593, %v1592
        %v1599 = vpack.c.b16 %v1595, %v1594
        %1604 = vst [vmem:[%s743] sm:$0xff] %v1596
        %1605 = vst [vmem:[%s743 + $0x8] sm:$0xff] %v1597
        %1606 = vst [vmem:[%s743 + $0x10] sm:$0x33] %v1598
        %1607 = vst [vmem:[%s743 + $0x18] sm:$0x33] %v1599
        %s1608 = sand.u32 %s222, 1
        %s1609 = sand.u32 %s222, 1
        %s1610 = smul.addr %s1609, 32
        %s1611 = scalar_lea.vmem [#allocation3], %s1610
        // Predicated region
        $region123: #{update_sh_coeffs.1} parent=117 // pred_check
          %p1612 = pneg %p232
        $region124: #{update_sh_coeffs.1} parent=117 // pred_check_branch
          %1614 = sbr.rel (%p1612) target = $region126
        $region125: #{update_sh_coeffs.1} parent=117 // pred_region
          %s1615 = smul.u32 4, %s20
          %s1616 = ssub.s32 5, %s1615
          %p1617 = scmp.lt.s32.totalorder %s1616, 4
          %s1618 = scalar_select %p1617, %s1616, 4
          %s1619 = smul.u32 128, %s1618
          %p1620 = scmp.ne.s32.totalorder 0, %s1619
          %s1621 = smul.addr %s1615, 4
          %s1622 = scalar_lea.vmem %s9, %s1621
          %s1623 = smul.u32 %s1618, 4
          // Predicated region
          $region127: #{update_sh_coeffs.1} parent=125 // pred_check
            %p1624 = pneg %p1620
          $region128: #{update_sh_coeffs.1} parent=125 // pred_check_branch
            %1626 = sbr.rel (%p1624) target = $region130
          $region129: #{update_sh_coeffs.1} parent=125 // pred_region
            %p1627 = scmp.lt.u32.totalorder %s1623, 8
            %p1628 = pneg %p1627
            // Predicated region
            $region131: #{update_sh_coeffs.1} parent=129 // pred_check
              _
            $region132: #{update_sh_coeffs.1} parent=129 // pred_check_branch
              %1630 = sbr.rel (%p1627) target = $region134
            $region133: #{update_sh_coeffs.1} parent=129 // pred_region
              %s1647 = sand.u32 %s1623, 7
              %p1648 = scmp.eq.s32.totalorder %s1647, 0
              // Predicated region
              $region146: #{update_sh_coeffs.1} parent=133 // pred_check
                %p1649 = pneg %p1648
              $region147: #{update_sh_coeffs.1} parent=133 // pred_check_branch
                %1651 = sbr.rel (%p1649) target = $region149
              $region148: #{update_sh_coeffs.1} parent=133 // pred_region
                %s1652 = sshrl.u32 %s1623, 3
                %s1653 = sshrl.u32 %s1652, 5
                // While loop
                $region150: #{update_sh_coeffs.1} parent=148 // loop_pre_header
                  _
                $region151: #{update_sh_coeffs.1} parent=148 // loop_header
                  %s1657 = sphi 0, %s1659
                  %p1658 = scmp.ge.s32.totalorder %s1657, %s1653
                  %s1662 = sphi 0, %s1795
                  %s1663 = sphi %s1611, %s1798
                  %s1664 = sphi %s1622, %s1799
                $region152: #{update_sh_coeffs.1} parent=148 // loop_header_branch
                  %1661 = sbr.rel (%p1658) target = $region156
                $region153: #{update_sh_coeffs.1} parent=148 // loop_body
                  %v1665 = vld [vmem:[%s1663] sm:$0xff]
                  %1666 = vst [vmem:[%s1664] sm:$0xff] %v1665
                  %v1667 = vld [vmem:[%s1663 + $0x8] sm:$0xff]
                  %1668 = vst [vmem:[%s1664 + $0x8] sm:$0xff] %v1667
                  %v1669 = vld [vmem:[%s1663 + $0x10] sm:$0xff]
                  %1670 = vst [vmem:[%s1664 + $0x10] sm:$0xff] %v1669
                  %v1671 = vld [vmem:[%s1663 + $0x18] sm:$0xff]
                  %1672 = vst [vmem:[%s1664 + $0x18] sm:$0xff] %v1671
                  %v1673 = vld [vmem:[%s1663 + $0x20] sm:$0xff]
                  %1674 = vst [vmem:[%s1664 + $0x20] sm:$0xff] %v1673
                  %v1675 = vld [vmem:[%s1663 + $0x28] sm:$0xff]
                  %1676 = vst [vmem:[%s1664 + $0x28] sm:$0xff] %v1675
                  %v1677 = vld [vmem:[%s1663 + $0x30] sm:$0xff]
                  %1678 = vst [vmem:[%s1664 + $0x30] sm:$0xff] %v1677
                  %v1679 = vld [vmem:[%s1663 + $0x38] sm:$0xff]
                  %1680 = vst [vmem:[%s1664 + $0x38] sm:$0xff] %v1679
                  %v1681 = vld [vmem:[%s1663 + $0x40] sm:$0xff]
                  %1682 = vst [vmem:[%s1664 + $0x40] sm:$0xff] %v1681
                  %v1683 = vld [vmem:[%s1663 + $0x48] sm:$0xff]
                  %1684 = vst [vmem:[%s1664 + $0x48] sm:$0xff] %v1683
                  %v1685 = vld [vmem:[%s1663 + $0x50] sm:$0xff]
                  %1686 = vst [vmem:[%s1664 + $0x50] sm:$0xff] %v1685
                  %v1687 = vld [vmem:[%s1663 + $0x58] sm:$0xff]
                  %1688 = vst [vmem:[%s1664 + $0x58] sm:$0xff] %v1687
                  %v1689 = vld [vmem:[%s1663 + $0x60] sm:$0xff]
                  %1690 = vst [vmem:[%s1664 + $0x60] sm:$0xff] %v1689
                  %v1691 = vld [vmem:[%s1663 + $0x68] sm:$0xff]
                  %1692 = vst [vmem:[%s1664 + $0x68] sm:$0xff] %v1691
                  %v1693 = vld [vmem:[%s1663 + $0x70] sm:$0xff]
                  %1694 = vst [vmem:[%s1664 + $0x70] sm:$0xff] %v1693
                  %v1695 = vld [vmem:[%s1663 + $0x78] sm:$0xff]
                  %1696 = vst [vmem:[%s1664 + $0x78] sm:$0xff] %v1695
                  %v1697 = vld [vmem:[%s1663 + $0x80] sm:$0xff]
                  %1698 = vst [vmem:[%s1664 + $0x80] sm:$0xff] %v1697
                  %v1699 = vld [vmem:[%s1663 + $0x88] sm:$0xff]
                  %1700 = vst [vmem:[%s1664 + $0x88] sm:$0xff] %v1699
                  %v1701 = vld [vmem:[%s1663 + $0x90] sm:$0xff]
                  %1702 = vst [vmem:[%s1664 + $0x90] sm:$0xff] %v1701
                  %v1703 = vld [vmem:[%s1663 + $0x98] sm:$0xff]
                  %1704 = vst [vmem:[%s1664 + $0x98] sm:$0xff] %v1703
                  %v1705 = vld [vmem:[%s1663 + $0xa0] sm:$0xff]
                  %1706 = vst [vmem:[%s1664 + $0xa0] sm:$0xff] %v1705
                  %v1707 = vld [vmem:[%s1663 + $0xa8] sm:$0xff]
                  %1708 = vst [vmem:[%s1664 + $0xa8] sm:$0xff] %v1707
                  %v1709 = vld [vmem:[%s1663 + $0xb0] sm:$0xff]
                  %1710 = vst [vmem:[%s1664 + $0xb0] sm:$0xff] %v1709
                  %v1711 = vld [vmem:[%s1663 + $0xb8] sm:$0xff]
                  %1712 = vst [vmem:[%s1664 + $0xb8] sm:$0xff] %v1711
                  %v1713 = vld [vmem:[%s1663 + $0xc0] sm:$0xff]
                  %1714 = vst [vmem:[%s1664 + $0xc0] sm:$0xff] %v1713
                  %v1715 = vld [vmem:[%s1663 + $0xc8] sm:$0xff]
                  %1716 = vst [vmem:[%s1664 + $0xc8] sm:$0xff] %v1715
                  %v1717 = vld [vmem:[%s1663 + $0xd0] sm:$0xff]
                  %1718 = vst [vmem:[%s1664 + $0xd0] sm:$0xff] %v1717
                  %v1719 = vld [vmem:[%s1663 + $0xd8] sm:$0xff]
                  %1720 = vst [vmem:[%s1664 + $0xd8] sm:$0xff] %v1719
                  %v1721 = vld [vmem:[%s1663 + $0xe0] sm:$0xff]
                  %1722 = vst [vmem:[%s1664 + $0xe0] sm:$0xff] %v1721
                  %v1723 = vld [vmem:[%s1663 + $0xe8] sm:$0xff]
                  %1724 = vst [vmem:[%s1664 + $0xe8] sm:$0xff] %v1723
                  %v1725 = vld [vmem:[%s1663 + $0xf0] sm:$0xff]
                  %1726 = vst [vmem:[%s1664 + $0xf0] sm:$0xff] %v1725
                  %v1727 = vld [vmem:[%s1663 + $0xf8] sm:$0xff]
                  %1728 = vst [vmem:[%s1664 + $0xf8] sm:$0xff] %v1727
                  %v1729 = vld [vmem:[%s1663 + $0x10] sm:$0xff]
                  %1730 = vst [vmem:[%s1664 + $0x14] sm:$0xff] %v1729
                  %v1731 = vld [vmem:[%s1663 + $0x18] sm:$0xff]
                  %1732 = vst [vmem:[%s1664 + $0x1c] sm:$0xff] %v1731
                  %v1733 = vld [vmem:[%s1663 + $0x20] sm:$0xff]
                  %1734 = vst [vmem:[%s1664 + $0x24] sm:$0xff] %v1733
                  %v1735 = vld [vmem:[%s1663 + $0x28] sm:$0xff]
                  %1736 = vst [vmem:[%s1664 + $0x2c] sm:$0xff] %v1735
                  %v1737 = vld [vmem:[%s1663 + $0x30] sm:$0xff]
                  %1738 = vst [vmem:[%s1664 + $0x34] sm:$0xff] %v1737
                  %v1739 = vld [vmem:[%s1663 + $0x38] sm:$0xff]
                  %1740 = vst [vmem:[%s1664 + $0x3c] sm:$0xff] %v1739
                  %v1741 = vld [vmem:[%s1663 + $0x40] sm:$0xff]
                  %1742 = vst [vmem:[%s1664 + $0x44] sm:$0xff] %v1741
                  %v1743 = vld [vmem:[%s1663 + $0x48] sm:$0xff]
                  %1744 = vst [vmem:[%s1664 + $0x4c] sm:$0xff] %v1743
                  %v1745 = vld [vmem:[%s1663 + $0x50] sm:$0xff]
                  %1746 = vst [vmem:[%s1664 + $0x54] sm:$0xff] %v1745
                  %v1747 = vld [vmem:[%s1663 + $0x58] sm:$0xff]
                  %1748 = vst [vmem:[%s1664 + $0x5c] sm:$0xff] %v1747
                  %v1749 = vld [vmem:[%s1663 + $0x60] sm:$0xff]
                  %1750 = vst [vmem:[%s1664 + $0x64] sm:$0xff] %v1749
                  %v1751 = vld [vmem:[%s1663 + $0x68] sm:$0xff]
                  %1752 = vst [vmem:[%s1664 + $0x6c] sm:$0xff] %v1751
                  %v1753 = vld [vmem:[%s1663 + $0x70] sm:$0xff]
                  %1754 = vst [vmem:[%s1664 + $0x74] sm:$0xff] %v1753
                  %v1755 = vld [vmem:[%s1663 + $0x78] sm:$0xff]
                  %1756 = vst [vmem:[%s1664 + $0x7c] sm:$0xff] %v1755
                  %v1757 = vld [vmem:[%s1663 + $0x80] sm:$0xff]
                  %1758 = vst [vmem:[%s1664 + $0x84] sm:$0xff] %v1757
                  %v1759 = vld [vmem:[%s1663 + $0x88] sm:$0xff]
                  %1760 = vst [vmem:[%s1664 + $0x8c] sm:$0xff] %v1759
                  %v1761 = vld [vmem:[%s1663 + $0x90] sm:$0xff]
                  %1762 = vst [vmem:[%s1664 + $0x94] sm:$0xff] %v1761
                  %v1763 = vld [vmem:[%s1663 + $0x98] sm:$0xff]
                  %1764 = vst [vmem:[%s1664 + $0x9c] sm:$0xff] %v1763
                  %v1765 = vld [vmem:[%s1663 + $0xa0] sm:$0xff]
                  %1766 = vst [vmem:[%s1664 + $0xa4] sm:$0xff] %v1765
                  %v1767 = vld [vmem:[%s1663 + $0xa8] sm:$0xff]
                  %1768 = vst [vmem:[%s1664 + $0xac] sm:$0xff] %v1767
                  %v1769 = vld [vmem:[%s1663 + $0xb0] sm:$0xff]
                  %1770 = vst [vmem:[%s1664 + $0xb4] sm:$0xff] %v1769
                  %v1771 = vld [vmem:[%s1663 + $0xb8] sm:$0xff]
                  %1772 = vst [vmem:[%s1664 + $0xbc] sm:$0xff] %v1771
                  %v1773 = vld [vmem:[%s1663 + $0xc0] sm:$0xff]
                  %1774 = vst [vmem:[%s1664 + $0xc4] sm:$0xff] %v1773
                  %v1775 = vld [vmem:[%s1663 + $0xc8] sm:$0xff]
                  %1776 = vst [vmem:[%s1664 + $0xcc] sm:$0xff] %v1775
                  %v1777 = vld [vmem:[%s1663 + $0xd0] sm:$0xff]
                  %1778 = vst [vmem:[%s1664 + $0xd4] sm:$0xff] %v1777
                  %v1779 = vld [vmem:[%s1663 + $0xd8] sm:$0xff]
                  %1780 = vst [vmem:[%s1664 + $0xdc] sm:$0xff] %v1779
                  %v1781 = vld [vmem:[%s1663 + $0xe0] sm:$0xff]
                  %1782 = vst [vmem:[%s1664 + $0xe4] sm:$0xff] %v1781
                  %v1783 = vld [vmem:[%s1663 + $0xe8] sm:$0xff]
                  %1784 = vst [vmem:[%s1664 + $0xec] sm:$0xff] %v1783
                  %v1785 = vld [vmem:[%s1663 + $0xf0] sm:$0xff]
                  %1786 = vst [vmem:[%s1664 + $0xf4] sm:$0xff] %v1785
                  %v1787 = vld [vmem:[%s1663 + $0xf8] sm:$0xff]
                  %1788 = vst [vmem:[%s1664 + $0xfc] sm:$0xff] %v1787
                  %v1789 = vld [vmem:[%s1663 + $0x100] sm:$0xff]
                  %1790 = vst [vmem:[%s1664 + $0x104] sm:$0xff] %v1789
                  %v1791 = vld [vmem:[%s1663 + $0x108] sm:$0xff]
                  %1792 = vst [vmem:[%s1664 + $0x10c] sm:$0xff] %v1791
                  %s1793 = sadd.s32 1, %s1662
                  %p1794 = scmp.ge.s32.totalorder %s1793, %s1653
                  %s1795 = scalar_select %p1794, 0, %s1793
                  %s1796 = smul.u32 %s1795, 256
                  %s1797 = smul.u32 %s1795, 256
                  %s1798 = scalar_lea.vmem %s1611, %s1796 [#allocation3]
                  %s1799 = scalar_lea.vmem %s1622, %s1797
                $region154: #{update_sh_coeffs.1} parent=148 // loop_footer
                  %s1659 = sadd.s32 %s1657, 1
                $region155: #{update_sh_coeffs.1} parent=148 // loop_footer_branch
                  %1656 = sbr.rel target = $region151
                $region156: #{update_sh_coeffs.1} parent=148 // loop_exit
                  _
                %s1800 = sshrl.u32 %s1652, 5
                %s1801 = sand.u32 %s1652, 31
                %s1802 = smul.u32 %s1800, 32
                %s1803 = smul.u32 128, %s1802
                %s1804 = sshra.s32 %s1803, 4
                %s1805 = scalar_lea.vmem %s1611, %s1804 [#allocation3]
                %s1806 = smul.u32 128, %s1802
                %s1807 = sshra.s32 %s1806, 4
                %s1808 = scalar_lea.vmem %s1622, %s1807
                // While loop
                $region157: #{update_sh_coeffs.1} parent=148 // loop_pre_header
                  _
                $region158: #{update_sh_coeffs.1} parent=148 // loop_header
                  %s1812 = sphi 0, %s1814
                  %p1813 = scmp.ge.s32.totalorder %s1812, %s1801
                  %s1817 = sphi 0, %s1826
                  %s1818 = sphi %s1805, %s1829
                  %s1819 = sphi %s1808, %s1830
                $region159: #{update_sh_coeffs.1} parent=148 // loop_header_branch
                  %1816 = sbr.rel (%p1813) target = $region163
                $region160: #{update_sh_coeffs.1} parent=148 // loop_body
                  %v1820 = vld [vmem:[%s1818] sm:$0xff]
                  %1821 = vst [vmem:[%s1819] sm:$0xff] %v1820
                  %v1822 = vld [vmem:[%s1818 + $0x10] sm:$0xff]
                  %1823 = vst [vmem:[%s1819 + $0x14] sm:$0xff] %v1822
                  %s1824 = sadd.s32 1, %s1817
                  %p1825 = scmp.ge.s32.totalorder %s1824, %s1801
                  %s1826 = scalar_select %p1825, 0, %s1824
                  %s1827 = smul.u32 %s1826, 8
                  %s1828 = smul.u32 %s1826, 8
                  %s1829 = scalar_lea.vmem %s1805, %s1827 [#allocation3]
                  %s1830 = scalar_lea.vmem %s1808, %s1828
                $region161: #{update_sh_coeffs.1} parent=148 // loop_footer
                  %s1814 = sadd.s32 %s1812, 1
                $region162: #{update_sh_coeffs.1} parent=148 // loop_footer_branch
                  %1811 = sbr.rel target = $region158
                $region163: #{update_sh_coeffs.1} parent=148 // loop_exit
                  _
              $region149: #{update_sh_coeffs.1} parent=133 // pred_fallthru
                _
              %p1831 = pneg %p1648
              // Predicated region
              $region164: #{update_sh_coeffs.1} parent=133 // pred_check
                _
              $region165: #{update_sh_coeffs.1} parent=133 // pred_check_branch
                %1833 = sbr.rel (%p1648) target = $region167
              $region166: #{update_sh_coeffs.1} parent=133 // pred_region
                %s1834 = sand.u32 %s1623, 7
                %s1835 = ssub.s32 %s1623, %s1834
                %s1836 = scalar_lea.vmem %s1611, %s1835 [#allocation3]
                %s1837 = ssub.s32 %s1623, %s1834
                %s1838 = scalar_lea.vmem %s1622, %s1837
                %s1839 = sshrl.u32 %s1623, 3
                %s1840 = sshrl.u32 %s1839, 5
                // While loop
                $region168: #{update_sh_coeffs.1} parent=166 // loop_pre_header
                  _
                $region169: #{update_sh_coeffs.1} parent=166 // loop_header
                  %s1844 = sphi 0, %s1846
                  %p1845 = scmp.ge.s32.totalorder %s1844, %s1840
                  %s1849 = sphi 0, %s1982
                  %s1850 = sphi %s1611, %s1985
                  %s1851 = sphi %s1622, %s1986
                $region170: #{update_sh_coeffs.1} parent=166 // loop_header_branch
                  %1848 = sbr.rel (%p1845) target = $region174
                $region171: #{update_sh_coeffs.1} parent=166 // loop_body
                  %v1852 = vld [vmem:[%s1850] sm:$0xff]
                  %1853 = vst [vmem:[%s1851] sm:$0xff] %v1852
                  %v1854 = vld [vmem:[%s1850 + $0x8] sm:$0xff]
                  %1855 = vst [vmem:[%s1851 + $0x8] sm:$0xff] %v1854
                  %v1856 = vld [vmem:[%s1850 + $0x10] sm:$0xff]
                  %1857 = vst [vmem:[%s1851 + $0x10] sm:$0xff] %v1856
                  %v1858 = vld [vmem:[%s1850 + $0x18] sm:$0xff]
                  %1859 = vst [vmem:[%s1851 + $0x18] sm:$0xff] %v1858
                  %v1860 = vld [vmem:[%s1850 + $0x20] sm:$0xff]
                  %1861 = vst [vmem:[%s1851 + $0x20] sm:$0xff] %v1860
                  %v1862 = vld [vmem:[%s1850 + $0x28] sm:$0xff]
                  %1863 = vst [vmem:[%s1851 + $0x28] sm:$0xff] %v1862
                  %v1864 = vld [vmem:[%s1850 + $0x30] sm:$0xff]
                  %1865 = vst [vmem:[%s1851 + $0x30] sm:$0xff] %v1864
                  %v1866 = vld [vmem:[%s1850 + $0x38] sm:$0xff]
                  %1867 = vst [vmem:[%s1851 + $0x38] sm:$0xff] %v1866
                  %v1868 = vld [vmem:[%s1850 + $0x40] sm:$0xff]
                  %1869 = vst [vmem:[%s1851 + $0x40] sm:$0xff] %v1868
                  %v1870 = vld [vmem:[%s1850 + $0x48] sm:$0xff]
                  %1871 = vst [vmem:[%s1851 + $0x48] sm:$0xff] %v1870
                  %v1872 = vld [vmem:[%s1850 + $0x50] sm:$0xff]
                  %1873 = vst [vmem:[%s1851 + $0x50] sm:$0xff] %v1872
                  %v1874 = vld [vmem:[%s1850 + $0x58] sm:$0xff]
                  %1875 = vst [vmem:[%s1851 + $0x58] sm:$0xff] %v1874
                  %v1876 = vld [vmem:[%s1850 + $0x60] sm:$0xff]
                  %1877 = vst [vmem:[%s1851 + $0x60] sm:$0xff] %v1876
                  %v1878 = vld [vmem:[%s1850 + $0x68] sm:$0xff]
                  %1879 = vst [vmem:[%s1851 + $0x68] sm:$0xff] %v1878
                  %v1880 = vld [vmem:[%s1850 + $0x70] sm:$0xff]
                  %1881 = vst [vmem:[%s1851 + $0x70] sm:$0xff] %v1880
                  %v1882 = vld [vmem:[%s1850 + $0x78] sm:$0xff]
                  %1883 = vst [vmem:[%s1851 + $0x78] sm:$0xff] %v1882
                  %v1884 = vld [vmem:[%s1850 + $0x80] sm:$0xff]
                  %1885 = vst [vmem:[%s1851 + $0x80] sm:$0xff] %v1884
                  %v1886 = vld [vmem:[%s1850 + $0x88] sm:$0xff]
                  %1887 = vst [vmem:[%s1851 + $0x88] sm:$0xff] %v1886
                  %v1888 = vld [vmem:[%s1850 + $0x90] sm:$0xff]
                  %1889 = vst [vmem:[%s1851 + $0x90] sm:$0xff] %v1888
                  %v1890 = vld [vmem:[%s1850 + $0x98] sm:$0xff]
                  %1891 = vst [vmem:[%s1851 + $0x98] sm:$0xff] %v1890
                  %v1892 = vld [vmem:[%s1850 + $0xa0] sm:$0xff]
                  %1893 = vst [vmem:[%s1851 + $0xa0] sm:$0xff] %v1892
                  %v1894 = vld [vmem:[%s1850 + $0xa8] sm:$0xff]
                  %1895 = vst [vmem:[%s1851 + $0xa8] sm:$0xff] %v1894
                  %v1896 = vld [vmem:[%s1850 + $0xb0] sm:$0xff]
                  %1897 = vst [vmem:[%s1851 + $0xb0] sm:$0xff] %v1896
                  %v1898 = vld [vmem:[%s1850 + $0xb8] sm:$0xff]
                  %1899 = vst [vmem:[%s1851 + $0xb8] sm:$0xff] %v1898
                  %v1900 = vld [vmem:[%s1850 + $0xc0] sm:$0xff]
                  %1901 = vst [vmem:[%s1851 + $0xc0] sm:$0xff] %v1900
                  %v1902 = vld [vmem:[%s1850 + $0xc8] sm:$0xff]
                  %1903 = vst [vmem:[%s1851 + $0xc8] sm:$0xff] %v1902
                  %v1904 = vld [vmem:[%s1850 + $0xd0] sm:$0xff]
                  %1905 = vst [vmem:[%s1851 + $0xd0] sm:$0xff] %v1904
                  %v1906 = vld [vmem:[%s1850 + $0xd8] sm:$0xff]
                  %1907 = vst [vmem:[%s1851 + $0xd8] sm:$0xff] %v1906
                  %v1908 = vld [vmem:[%s1850 + $0xe0] sm:$0xff]
                  %1909 = vst [vmem:[%s1851 + $0xe0] sm:$0xff] %v1908
                  %v1910 = vld [vmem:[%s1850 + $0xe8] sm:$0xff]
                  %1911 = vst [vmem:[%s1851 + $0xe8] sm:$0xff] %v1910
                  %v1912 = vld [vmem:[%s1850 + $0xf0] sm:$0xff]
                  %1913 = vst [vmem:[%s1851 + $0xf0] sm:$0xff] %v1912
                  %v1914 = vld [vmem:[%s1850 + $0xf8] sm:$0xff]
                  %1915 = vst [vmem:[%s1851 + $0xf8] sm:$0xff] %v1914
                  %v1916 = vld [vmem:[%s1850 + $0x10] sm:$0xff]
                  %1917 = vst [vmem:[%s1851 + $0x14] sm:$0xff] %v1916
                  %v1918 = vld [vmem:[%s1850 + $0x18] sm:$0xff]
                  %1919 = vst [vmem:[%s1851 + $0x1c] sm:$0xff] %v1918
                  %v1920 = vld [vmem:[%s1850 + $0x20] sm:$0xff]
                  %1921 = vst [vmem:[%s1851 + $0x24] sm:$0xff] %v1920
                  %v1922 = vld [vmem:[%s1850 + $0x28] sm:$0xff]
                  %1923 = vst [vmem:[%s1851 + $0x2c] sm:$0xff] %v1922
                  %v1924 = vld [vmem:[%s1850 + $0x30] sm:$0xff]
                  %1925 = vst [vmem:[%s1851 + $0x34] sm:$0xff] %v1924
                  %v1926 = vld [vmem:[%s1850 + $0x38] sm:$0xff]
                  %1927 = vst [vmem:[%s1851 + $0x3c] sm:$0xff] %v1926
                  %v1928 = vld [vmem:[%s1850 + $0x40] sm:$0xff]
                  %1929 = vst [vmem:[%s1851 + $0x44] sm:$0xff] %v1928
                  %v1930 = vld [vmem:[%s1850 + $0x48] sm:$0xff]
                  %1931 = vst [vmem:[%s1851 + $0x4c] sm:$0xff] %v1930
                  %v1932 = vld [vmem:[%s1850 + $0x50] sm:$0xff]
                  %1933 = vst [vmem:[%s1851 + $0x54] sm:$0xff] %v1932
                  %v1934 = vld [vmem:[%s1850 + $0x58] sm:$0xff]
                  %1935 = vst [vmem:[%s1851 + $0x5c] sm:$0xff] %v1934
                  %v1936 = vld [vmem:[%s1850 + $0x60] sm:$0xff]
                  %1937 = vst [vmem:[%s1851 + $0x64] sm:$0xff] %v1936
                  %v1938 = vld [vmem:[%s1850 + $0x68] sm:$0xff]
                  %1939 = vst [vmem:[%s1851 + $0x6c] sm:$0xff] %v1938
                  %v1940 = vld [vmem:[%s1850 + $0x70] sm:$0xff]
                  %1941 = vst [vmem:[%s1851 + $0x74] sm:$0xff] %v1940
                  %v1942 = vld [vmem:[%s1850 + $0x78] sm:$0xff]
                  %1943 = vst [vmem:[%s1851 + $0x7c] sm:$0xff] %v1942
                  %v1944 = vld [vmem:[%s1850 + $0x80] sm:$0xff]
                  %1945 = vst [vmem:[%s1851 + $0x84] sm:$0xff] %v1944
                  %v1946 = vld [vmem:[%s1850 + $0x88] sm:$0xff]
                  %1947 = vst [vmem:[%s1851 + $0x8c] sm:$0xff] %v1946
                  %v1948 = vld [vmem:[%s1850 + $0x90] sm:$0xff]
                  %1949 = vst [vmem:[%s1851 + $0x94] sm:$0xff] %v1948
                  %v1950 = vld [vmem:[%s1850 + $0x98] sm:$0xff]
                  %1951 = vst [vmem:[%s1851 + $0x9c] sm:$0xff] %v1950
                  %v1952 = vld [vmem:[%s1850 + $0xa0] sm:$0xff]
                  %1953 = vst [vmem:[%s1851 + $0xa4] sm:$0xff] %v1952
                  %v1954 = vld [vmem:[%s1850 + $0xa8] sm:$0xff]
                  %1955 = vst [vmem:[%s1851 + $0xac] sm:$0xff] %v1954
                  %v1956 = vld [vmem:[%s1850 + $0xb0] sm:$0xff]
                  %1957 = vst [vmem:[%s1851 + $0xb4] sm:$0xff] %v1956
                  %v1958 = vld [vmem:[%s1850 + $0xb8] sm:$0xff]
                  %1959 = vst [vmem:[%s1851 + $0xbc] sm:$0xff] %v1958
                  %v1960 = vld [vmem:[%s1850 + $0xc0] sm:$0xff]
                  %1961 = vst [vmem:[%s1851 + $0xc4] sm:$0xff] %v1960
                  %v1962 = vld [vmem:[%s1850 + $0xc8] sm:$0xff]
                  %1963 = vst [vmem:[%s1851 + $0xcc] sm:$0xff] %v1962
                  %v1964 = vld [vmem:[%s1850 + $0xd0] sm:$0xff]
                  %1965 = vst [vmem:[%s1851 + $0xd4] sm:$0xff] %v1964
                  %v1966 = vld [vmem:[%s1850 + $0xd8] sm:$0xff]
                  %1967 = vst [vmem:[%s1851 + $0xdc] sm:$0xff] %v1966
                  %v1968 = vld [vmem:[%s1850 + $0xe0] sm:$0xff]
                  %1969 = vst [vmem:[%s1851 + $0xe4] sm:$0xff] %v1968
                  %v1970 = vld [vmem:[%s1850 + $0xe8] sm:$0xff]
                  %1971 = vst [vmem:[%s1851 + $0xec] sm:$0xff] %v1970
                  %v1972 = vld [vmem:[%s1850 + $0xf0] sm:$0xff]
                  %1973 = vst [vmem:[%s1851 + $0xf4] sm:$0xff] %v1972
                  %v1974 = vld [vmem:[%s1850 + $0xf8] sm:$0xff]
                  %1975 = vst [vmem:[%s1851 + $0xfc] sm:$0xff] %v1974
                  %v1976 = vld [vmem:[%s1850 + $0x100] sm:$0xff]
                  %1977 = vst [vmem:[%s1851 + $0x104] sm:$0xff] %v1976
                  %v1978 = vld [vmem:[%s1850 + $0x108] sm:$0xff]
                  %1979 = vst [vmem:[%s1851 + $0x10c] sm:$0xff] %v1978
                  %s1980 = sadd.s32 1, %s1849
                  %p1981 = scmp.ge.s32.totalorder %s1980, %s1840
                  %s1982 = scalar_select %p1981, 0, %s1980
                  %s1983 = smul.u32 %s1982, 256
                  %s1984 = smul.u32 %s1982, 256
                  %s1985 = scalar_lea.vmem %s1611, %s1983 [#allocation3]
                  %s1986 = scalar_lea.vmem %s1622, %s1984
                $region172: #{update_sh_coeffs.1} parent=166 // loop_footer
                  %s1846 = sadd.s32 %s1844, 1
                $region173: #{update_sh_coeffs.1} parent=166 // loop_footer_branch
                  %1843 = sbr.rel target = $region169
                $region174: #{update_sh_coeffs.1} parent=166 // loop_exit
                  _
                %s1987 = sshrl.u32 %s1839, 5
                %s1988 = sand.u32 %s1839, 31
                %s1989 = smul.u32 %s1987, 32
                %s1990 = smul.u32 128, %s1989
                %s1991 = sshra.s32 %s1990, 4
                %s1992 = scalar_lea.vmem %s1611, %s1991 [#allocation3]
                %s1993 = smul.u32 128, %s1989
                %s1994 = sshra.s32 %s1993, 4
                %s1995 = scalar_lea.vmem %s1622, %s1994
                // While loop
                $region175: #{update_sh_coeffs.1} parent=166 // loop_pre_header
                  _
                $region176: #{update_sh_coeffs.1} parent=166 // loop_header
                  %s1999 = sphi 0, %s2001
                  %p2000 = scmp.ge.s32.totalorder %s1999, %s1988
                  %s2004 = sphi 0, %s2013
                  %s2005 = sphi %s1992, %s2016
                  %s2006 = sphi %s1995, %s2017
                $region177: #{update_sh_coeffs.1} parent=166 // loop_header_branch
                  %2003 = sbr.rel (%p2000) target = $region181
                $region178: #{update_sh_coeffs.1} parent=166 // loop_body
                  %v2007 = vld [vmem:[%s2005] sm:$0xff]
                  %2008 = vst [vmem:[%s2006] sm:$0xff] %v2007
                  %v2009 = vld [vmem:[%s2005 + $0x10] sm:$0xff]
                  %2010 = vst [vmem:[%s2006 + $0x14] sm:$0xff] %v2009
                  %s2011 = sadd.s32 1, %s2004
                  %p2012 = scmp.ge.s32.totalorder %s2011, %s1988
                  %s2013 = scalar_select %p2012, 0, %s2011
                  %s2014 = smul.u32 %s2013, 8
                  %s2015 = smul.u32 %s2013, 8
                  %s2016 = scalar_lea.vmem %s1992, %s2014 [#allocation3]
                  %s2017 = scalar_lea.vmem %s1995, %s2015
                $region179: #{update_sh_coeffs.1} parent=166 // loop_footer
                  %s2001 = sadd.s32 %s1999, 1
                $region180: #{update_sh_coeffs.1} parent=166 // loop_footer_branch
                  %1998 = sbr.rel target = $region176
                $region181: #{update_sh_coeffs.1} parent=166 // loop_exit
                  _
                %s2018 = sshllo.u32 0, %s1834
                loop: start=0, step=1, limit=1
                $region182: #{update_sh_coeffs.1} parent=166 // loop_pre_header
                  _
                $region183: #{update_sh_coeffs.1} parent=166 // loop_header
                  %s2020 = sphi 0, %s2024
                  %p2021 = scmp.ge.s32.totalorder %s2020, 1
                  %s2025 = sphi %s1836, %s1836
                  %s2026 = sphi %s1838, %s1838
                $region184: #{update_sh_coeffs.1} parent=166 // loop_header_branch
                  %2023 = sbr.rel (%p2021) target = $region188
                $region185: #{update_sh_coeffs.1} parent=166 // loop_body
                  %v2027 = vld [vmem:[%s2025] sm:%s2018]
                  %2028 = vst [vmem:[%s2026] sm:%s2018] %v2027
                  %v2029 = vld [vmem:[%s2025 + $0x10] sm:%s2018]
                  %2030 = vst [vmem:[%s2026 + $0x14] sm:%s2018] %v2029
                $region186: #{update_sh_coeffs.1} parent=166 // loop_footer
                  %s2024 = sadd.s32 1, %s2020
                $region187: #{update_sh_coeffs.1} parent=166 // loop_footer_branch
                  %2019 = sbr.rel target = $region183
                $region188: #{update_sh_coeffs.1} parent=166 // loop_exit
                  _
              $region167: #{update_sh_coeffs.1} parent=133 // pred_fallthru
                _
            $region134: #{update_sh_coeffs.1} parent=129 // pred_fallthru
              _
            // Predicated region
            $region135: #{update_sh_coeffs.1} parent=129 // pred_check
              %p1631 = pneg %p1627
            $region136: #{update_sh_coeffs.1} parent=129 // pred_check_branch
              %1633 = sbr.rel (%p1631) target = $region138
            $region137: #{update_sh_coeffs.1} parent=129 // pred_region
              %s1634 = sshllo.u32 0, %s1623
              loop: start=0, step=1, limit=1
              $region139: #{update_sh_coeffs.1} parent=137 // loop_pre_header
                _
              $region140: #{update_sh_coeffs.1} parent=137 // loop_header
                %s1636 = sphi 0, %s1640
                %p1637 = scmp.ge.s32.totalorder %s1636, 1
                %s1641 = sphi %s1611, %s1611
                %s1642 = sphi %s1622, %s1622
              $region141: #{update_sh_coeffs.1} parent=137 // loop_header_branch
                %1639 = sbr.rel (%p1637) target = $region145
              $region142: #{update_sh_coeffs.1} parent=137 // loop_body
                %v1643 = vld [vmem:[%s1641] sm:%s1634]
                %1644 = vst [vmem:[%s1642] sm:%s1634] %v1643
                %v1645 = vld [vmem:[%s1641 + $0x10] sm:%s1634]
                %1646 = vst [vmem:[%s1642 + $0x14] sm:%s1634] %v1645
              $region143: #{update_sh_coeffs.1} parent=137 // loop_footer
                %s1640 = sadd.s32 1, %s1636
              $region144: #{update_sh_coeffs.1} parent=137 // loop_footer_branch
                %1635 = sbr.rel target = $region140
              $region145: #{update_sh_coeffs.1} parent=137 // loop_exit
                _
            $region138: #{update_sh_coeffs.1} parent=129 // pred_fallthru
              _
          $region130: #{update_sh_coeffs.1} parent=125 // pred_fallthru
            _
          %2031 = vnop
        $region126: #{update_sh_coeffs.1} parent=117 // pred_fallthru
          _
      $region118: #{update_sh_coeffs.1} parent=5 // pred_fallthru
        _
      %p2032 = scmp.le.s32.totalorder 2, %s15
      // Predicated region
      $region189: #{update_sh_coeffs.1} parent=5 // pred_check
        %p2033 = pneg %p2032
      $region190: #{update_sh_coeffs.1} parent=5 // pred_check_branch
        %2035 = sbr.rel (%p2033) target = $region192
      $region191: #{update_sh_coeffs.1} parent=5 // pred_region
        %s2036 = ssub.s32 %s15, 2
        // Predicated region
        $region193: #{update_sh_coeffs.1} parent=191 // pred_check
          %p2037 = pneg %p238
        $region194: #{update_sh_coeffs.1} parent=191 // pred_check_branch
          %2039 = sbr.rel (%p2037) target = $region196
        $region195: #{update_sh_coeffs.1} parent=191 // pred_region
          %s2040 = sand.u32 %s223, 1
          %s2041 = sand.u32 %s223, 1
          %s2042 = smul.addr %s2041, 32
          %s2043 = scalar_lea.vmem [#allocation3], %s2042
        $region196: #{update_sh_coeffs.1} parent=191 // pred_fallthru
          _
      $region192: #{update_sh_coeffs.1} parent=5 // pred_fallthru
        _
    $region6: #{update_sh_coeffs.1} parent=1 // loop_footer
      %s19 = sadd.s32 1, %s15
    $region7: #{update_sh_coeffs.1} parent=1 // loop_footer_branch
      %14 = sbr.rel target = $region3
    $region8: #{update_sh_coeffs.1} parent=1 // loop_exit
      _

</llo_original>
